<compile_context>
chip_gen: v5e
topology: v5e:2x2
jax: 0.10.0
libtpu: 0.0.40
codegen_flags: <defaults>
</compile_context>

<pallas_src>
import math
import jax
import jax.numpy as jnp
from jax.experimental import pallas as pl
from jax.experimental.pallas import tpu as pltpu

# ---------------- configuration (small, consistent with the module) ----------------
BATCH = 2
SEQ = 8
EMB = 32
HEADS = 4
DHEAD = EMB // HEADS
FF = 4 * EMB
LN_EPS = 1e-5
NEG_INF = -1e9


# ------------------------------- Pallas kernel -------------------------------------
def encoder_layer_kernel(x_ref, bias_ref,
                         wq_ref, bq_ref, wk_ref, bk_ref, wv_ref, bv_ref,
                         wo_ref, bo_ref,
                         w1_ref, b1_ref, w2_ref, b2_ref,
                         gamma_ref, beta_ref,
                         out_ref):
    x = x_ref[...]                                  # (B*S, E)  f32
    bias = bias_ref[...]                            # (B*S, B*S) additive mask (0 / -1e9)
    xb = x.astype(jnp.bfloat16)

    # ---- fused Q/K/V projections over all batch rows (bf16 in, f32 accumulate) ----
    q = jnp.dot(xb, wq_ref[...], preferred_element_type=jnp.float32) + bq_ref[...]
    k = jnp.dot(xb, wk_ref[...], preferred_element_type=jnp.float32) + bk_ref[...]
    v = jnp.dot(xb, wv_ref[...], preferred_element_type=jnp.float32) + bv_ref[...]

    scale = 1.0 / math.sqrt(DHEAD)
    attn = jnp.zeros_like(x)                        # f32 accumulator (B*S, E)

    for h in range(HEADS):                          # static unroll, HEADS = 4
        lo = h * DHEAD
        qh = q[:, lo:lo + DHEAD].astype(jnp.bfloat16)          # (B*S, Dh)
        kh_t = k[:, lo:lo + DHEAD].T.astype(jnp.bfloat16)      # (Dh, B*S)
        vh = v[:, lo:lo + DHEAD].astype(jnp.bfloat16)          # (B*S, Dh)

        # Block-diagonal additive bias keeps rows of different batch elements
        # from attending to each other, so one flat (B*S, B*S) score matrix
        # replaces a per-batch loop.  Softmax math stays in f32.
        s = jnp.dot(qh, kh_t, preferred_element_type=jnp.float32) * scale + bias
        m = jnp.max(s, axis=-1, keepdims=True)
        e = jnp.exp(s - m)
        p = e * pl.reciprocal(jnp.sum(e, axis=-1, keepdims=True), approx=True)
        # NOTE: a fully-masked query row would give a uniform distribution over
        # all B*S keys (degenerate case, not exercised here).

        o_h = jnp.dot(p.astype(jnp.bfloat16), vh,
                      preferred_element_type=jnp.float32)      # (B*S, Dh)

        # Fold the output projection into the head loop: accumulate through the
        # corresponding row-slice of Wo instead of concatenating heads.
        wo_h = wo_ref[lo:lo + DHEAD, :].astype(jnp.bfloat16)   # (Dh, E)
        attn = attn + jnp.dot(o_h.astype(jnp.bfloat16), wo_h,
                              preferred_element_type=jnp.float32)

    attn = attn + bo_ref[...]

    # ---- shared ResNet_Block: LayerNorm(x + sublayer), stats in f32 ----
    gamma = gamma_ref[...]
    beta = beta_ref[...]

    def layer_norm(y):
        mu = jnp.mean(y, axis=-1, keepdims=True)
        var = jnp.mean((y - mu) * (y - mu), axis=-1, keepdims=True)
        return (y - mu) * jax.lax.rsqrt(var + LN_EPS) * gamma + beta

    res1 = layer_norm(x + attn)                                # (B*S, E)

    # ---- position-wise feed-forward (bf16 MXU inputs, f32 accumulate) ----
    h1 = jnp.dot(res1.astype(jnp.bfloat16), w1_ref[...],
                 preferred_element_type=jnp.float32) + b1_ref[...]
    h1 = jnp.maximum(h1, 0.0)
    ffn = jnp.dot(h1.astype(jnp.bfloat16), w2_ref[...],
                  preferred_element_type=jnp.float32) + b2_ref[...]

    out_ref[...] = layer_norm(res1 + ffn)


# ------------------------------- wrapper --------------------------------------------
def encoder_layer(src_data, src_mask, params):
    B, S, E = src_data.shape
    (wq, bq, wk, bk, wv, bv, wo, bo, w1, b1, w2, b2, gamma, beta) = params

    # Flatten batch*seq in the wrapper (free) so every dense op is one matmul.
    x2d = src_data.reshape(B * S, E)

    # Build the block-diagonal additive mask bias once (replaces HEADS in-kernel
    # compare+selects and the per-batch attention loop).
    same_batch = (jnp.arange(B)[:, None, None, None] ==
                  jnp.arange(B)[None, None, :, None])                    # (B,1,B,1)
    attend = (src_mask > 0.0)[:, :, None, :]                             # (B,S,1,S)
    bias = jnp.where(same_batch & attend, 0.0, NEG_INF)
    bias = bias.astype(jnp.float32).reshape(B * S, B * S)

    # bf16 weights: halve weight DMA, MXU-native on v5e/v6e/v7x (f32 accumulate
    # in-kernel).  Biases / LN params stay f32.  Wo stays f32 because it is
    # row-sliced per head inside the kernel (cast at the call site).
    bf16 = jnp.bfloat16
    ops = (x2d, bias,
           wq.astype(bf16), bq, wk.astype(bf16), bk, wv.astype(bf16), bv,
           wo, bo,
           w1.astype(bf16), b1, w2.astype(bf16), b2,
           gamma, beta)

    def full_spec(a):
        nd = a.ndim

        def imap(i):
            return (0,) * nd

        return pl.BlockSpec(a.shape, imap)

    out2d = pl.pallas_call(
        encoder_layer_kernel,
        out_shape=jax.ShapeDtypeStruct((B * S, E), jnp.float32),
        grid_spec=pltpu.PrefetchScalarGridSpec(
            num_scalar_prefetch=0,
            grid=(1,),                      # single step: total work is far below
                                            # the per-step pipeline overhead
            in_specs=[full_spec(a) for a in ops],
            out_specs=pl.BlockSpec((B * S, E), lambda i: (0, 0)),
        ),
        compiler_params=pltpu.CompilerParams(
            dimension_semantics=("arbitrary",)),
    )(*ops)

    return out2d.reshape(B, S, E)


# ------------------------------ reference (pure JAX) ---------------------------------
def encoder_layer_ref(x, mask, params, mm_dtype=jnp.float32):
    """Reference. mm_dtype controls the matmul-input dtype (f32 accumulate)."""
    (wq, bq, wk, bk, wv, bv, wo, bo, w1, b1, w2, b2, gamma, beta) = params
    f32 = jnp.float32
    c = lambda a: a.astype(mm_dtype)

    def mm(a, b):
        return jnp.dot(c(a), c(b), preferred_element_type=f32)

    B, S, E = x.shape
    x2 = x.reshape(B * S, E)
    q = mm(x2, wq) + bq
    k = mm(x2, wk) + bk
    v = mm(x2, wv) + bv
    qh = q.reshape(B, S, HEADS, DHEAD).transpose(0, 2, 1, 3)
    kh = k.reshape(B, S, HEADS, DHEAD).transpose(0, 2, 1, 3)
    vh = v.reshape(B, S, HEADS, DHEAD).transpose(0, 2, 1, 3)
    s = jnp.einsum("bhqd,bhkd->bhqk", c(qh), c(kh),
                   preferred_element_type=f32) / math.sqrt(DHEAD)
    s = jnp.where(mask[:, None, :, :] > 0.0, s, NEG_INF)
    p = jax.nn.softmax(s, axis=-1)
    o = jnp.einsum("bhqk,bhkd->bhqd", c(p), c(vh), preferred_element_type=f32)
    o = o.transpose(0, 2, 1, 3).reshape(B * S, E)
    attn = mm(o, wo) + bo

    def ln(y):
        mu = jnp.mean(y, axis=-1, keepdims=True)
        var = jnp.mean((y - mu) ** 2, axis=-1, keepdims=True)
        return (y - mu) * jax.lax.rsqrt(var + LN_EPS) * gamma + beta

    r1 = ln(x2 + attn)
    h1 = jnp.maximum(mm(r1, w1) + b1, 0.0)
    ffn = mm(h1, w2) + b2
    return ln(r1 + ffn).reshape(B, S, E)


# ------------------------------------ main --------------------------------------------
if __name__ == "__main__":
    key = jax.random.PRNGKey(0)
    keys = jax.random.split(key, 16)

    def init(k, shape, fan_in):
        return jax.random.normal(k, shape, jnp.float32) / math.sqrt(fan_in)

    params = (
        init(keys[0], (EMB, EMB), EMB), init(keys[1], (1, EMB), EMB),     # Wq, bq
        init(keys[2], (EMB, EMB), EMB), init(keys[3], (1, EMB), EMB),     # Wk, bk
        init(keys[4], (EMB, EMB), EMB), init(keys[5], (1, EMB), EMB),     # Wv, bv
        init(keys[6], (EMB, EMB), EMB), init(keys[7], (1, EMB), EMB),     # Wo, bo
        init(keys[8], (EMB, FF), EMB), init(keys[9], (1, FF), EMB),       # W1, b1
        init(keys[10], (FF, EMB), FF), init(keys[11], (1, EMB), FF),      # W2, b2
        jnp.ones((1, EMB), jnp.float32), jnp.zeros((1, EMB), jnp.float32),  # gamma, beta
    )

    src_data = jax.random.normal(keys[12], (BATCH, SEQ, EMB), jnp.float32)

    # padding-style mask: batch 0 attends to first 6 tokens, batch 1 to all 8
    lengths = jnp.array([6, 8], dtype=jnp.int32)
    key_valid = (jnp.arange(SEQ)[None, :] < lengths[:, None]).astype(jnp.float32)  # (B, S)
    src_mask = jnp.broadcast_to(key_valid[:, None, :], (BATCH, SEQ, SEQ))          # (B, S, S)

    out = jax.block_until_ready(encoder_layer(src_data, src_mask, params))
    assert out.shape == (BATCH, SEQ, EMB)

    # Structural check vs a reference that uses the same bf16-input / f32-accum
    # matmuls (residual slack is the approx-reciprocal softmax + summation order).
    ref_bf16 = encoder_layer_ref(src_data, src_mask, params, mm_dtype=jnp.bfloat16)
    assert jnp.allclose(out, ref_bf16, atol=1e-2, rtol=1e-2), \
        "mismatch vs bf16-matmul reference"

    # Fidelity check vs the pure-f32 reference (slack = bf16 MXU-input rounding).
    ref_f32 = encoder_layer_ref(src_data, src_mask, params, mm_dtype=jnp.float32)
    assert jnp.allclose(out, ref_f32, atol=1e-1, rtol=1e-1), \
        "mismatch vs f32 reference"

    print("KERNEL_OK")
</pallas_src>

<mosaic_0001>
module attributes {stable_mosaic.version = 11 : i64} {
  func.func @encoder_layer_kernel(%arg0: i32, %arg1: memref<16x32xf32, #tpu.memory_space<vmem>>, %arg2: memref<16x16xf32, #tpu.memory_space<vmem>>, %arg3: memref<32x32xbf16, #tpu.memory_space<vmem>>, %arg4: memref<1x32xf32, #tpu.memory_space<vmem>>, %arg5: memref<32x32xbf16, #tpu.memory_space<vmem>>, %arg6: memref<1x32xf32, #tpu.memory_space<vmem>>, %arg7: memref<32x32xbf16, #tpu.memory_space<vmem>>, %arg8: memref<1x32xf32, #tpu.memory_space<vmem>>, %arg9: memref<32x32xf32, #tpu.memory_space<vmem>>, %arg10: memref<1x32xf32, #tpu.memory_space<vmem>>, %arg11: memref<32x128xbf16, #tpu.memory_space<vmem>>, %arg12: memref<1x128xf32, #tpu.memory_space<vmem>>, %arg13: memref<128x32xbf16, #tpu.memory_space<vmem>>, %arg14: memref<1x32xf32, #tpu.memory_space<vmem>>, %arg15: memref<1x32xf32, #tpu.memory_space<vmem>>, %arg16: memref<1x32xf32, #tpu.memory_space<vmem>>, %arg17: memref<16x32xf32, #tpu.memory_space<vmem>>) attributes {dimension_semantics = [#tpu.dimension_semantics<arbitrary>], iteration_bounds = array<i64: 1>, scalar_prefetch = 0 : i64, scratch_operands = 0 : i64, tpu.core_type = #tpu.core_type<tc>, window_params = [{pipeline_mode = #tpu.pipeline_mode<synchronous>, transform_indices = @transform_0, window_bounds = array<i64: 16, 32>}, {pipeline_mode = #tpu.pipeline_mode<synchronous>, transform_indices = @transform_1, window_bounds = array<i64: 16, 16>}, {pipeline_mode = #tpu.pipeline_mode<synchronous>, transform_indices = @transform_2, window_bounds = array<i64: 32, 32>}, {pipeline_mode = #tpu.pipeline_mode<synchronous>, transform_indices = @transform_3, window_bounds = array<i64: 1, 32>}, {pipeline_mode = #tpu.pipeline_mode<synchronous>, transform_indices = @transform_4, window_bounds = array<i64: 32, 32>}, {pipeline_mode = #tpu.pipeline_mode<synchronous>, transform_indices = @transform_5, window_bounds = array<i64: 1, 32>}, {pipeline_mode = #tpu.pipeline_mode<synchronous>, transform_indices = @transform_6, window_bounds = array<i64: 32, 32>}, {pipeline_mode = #tpu.pipeline_mode<synchronous>, transform_indices = @transform_7, window_bounds = array<i64: 1, 32>}, {pipeline_mode = #tpu.pipeline_mode<synchronous>, transform_indices = @transform_8, window_bounds = array<i64: 32, 32>}, {pipeline_mode = #tpu.pipeline_mode<synchronous>, transform_indices = @transform_9, window_bounds = array<i64: 1, 32>}, {pipeline_mode = #tpu.pipeline_mode<synchronous>, transform_indices = @transform_10, window_bounds = array<i64: 32, 128>}, {pipeline_mode = #tpu.pipeline_mode<synchronous>, transform_indices = @transform_11, window_bounds = array<i64: 1, 128>}, {pipeline_mode = #tpu.pipeline_mode<synchronous>, transform_indices = @transform_12, window_bounds = array<i64: 128, 32>}, {pipeline_mode = #tpu.pipeline_mode<synchronous>, transform_indices = @transform_13, window_bounds = array<i64: 1, 32>}, {pipeline_mode = #tpu.pipeline_mode<synchronous>, transform_indices = @transform_14, window_bounds = array<i64: 1, 32>}, {pipeline_mode = #tpu.pipeline_mode<synchronous>, transform_indices = @transform_15, window_bounds = array<i64: 1, 32>}, {pipeline_mode = #tpu.pipeline_mode<synchronous>, transform_indices = @transform_16, window_bounds = array<i64: 16, 32>}]} {
    %c0 = arith.constant 0 : index
    %c0_0 = arith.constant 0 : index
    %0 = vector.load %arg1[%c0, %c0_0] : memref<16x32xf32, #tpu.memory_space<vmem>>, vector<16x32xf32>
    %c0_1 = arith.constant 0 : index
    %c0_2 = arith.constant 0 : index
    %1 = vector.load %arg2[%c0_1, %c0_2] : memref<16x16xf32, #tpu.memory_space<vmem>>, vector<16x16xf32>
    %2 = arith.truncf %0 : vector<16x32xf32> to vector<16x32xbf16>
    %c0_3 = arith.constant 0 : index
    %c0_4 = arith.constant 0 : index
    %3 = vector.load %arg3[%c0_3, %c0_4] : memref<32x32xbf16, #tpu.memory_space<vmem>>, vector<32x32xbf16>
    %cst = arith.constant dense<0.000000e+00> : vector<16x32xf32>
    %4 = tpu.matmul %2, %3, %cst {dimension_numbers = #tpu.dot_dimension_numbers<[1], [0], [0], [1], [0, 0, 1, 1], [], []>} : vector<16x32xbf16>, vector<32x32xbf16>, vector<16x32xf32> -> vector<16x32xf32>
    %c0_5 = arith.constant 0 : index
    %c0_6 = arith.constant 0 : index
    %5 = vector.load %arg4[%c0_5, %c0_6] : memref<1x32xf32, #tpu.memory_space<vmem>>, vector<1x32xf32>
    %6 = vector.broadcast %5 : vector<1x32xf32> to vector<16x32xf32>
    %7 = arith.addf %4, %6 : vector<16x32xf32>
    %c0_7 = arith.constant 0 : index
    %c0_8 = arith.constant 0 : index
    %8 = vector.load %arg5[%c0_7, %c0_8] : memref<32x32xbf16, #tpu.memory_space<vmem>>, vector<32x32xbf16>
    %cst_9 = arith.constant dense<0.000000e+00> : vector<16x32xf32>
    %9 = tpu.matmul %2, %8, %cst_9 {dimension_numbers = #tpu.dot_dimension_numbers<[1], [0], [0], [1], [0, 0, 1, 1], [], []>} : vector<16x32xbf16>, vector<32x32xbf16>, vector<16x32xf32> -> vector<16x32xf32>
    %c0_10 = arith.constant 0 : index
    %c0_11 = arith.constant 0 : index
    %10 = vector.load %arg6[%c0_10, %c0_11] : memref<1x32xf32, #tpu.memory_space<vmem>>, vector<1x32xf32>
    %11 = vector.broadcast %10 : vector<1x32xf32> to vector<16x32xf32>
    %12 = arith.addf %9, %11 : vector<16x32xf32>
    %c0_12 = arith.constant 0 : index
    %c0_13 = arith.constant 0 : index
    %13 = vector.load %arg7[%c0_12, %c0_13] : memref<32x32xbf16, #tpu.memory_space<vmem>>, vector<32x32xbf16>
    %cst_14 = arith.constant dense<0.000000e+00> : vector<16x32xf32>
    %14 = tpu.matmul %2, %13, %cst_14 {dimension_numbers = #tpu.dot_dimension_numbers<[1], [0], [0], [1], [0, 0, 1, 1], [], []>} : vector<16x32xbf16>, vector<32x32xbf16>, vector<16x32xf32> -> vector<16x32xf32>
    %c0_15 = arith.constant 0 : index
    %c0_16 = arith.constant 0 : index
    %15 = vector.load %arg8[%c0_15, %c0_16] : memref<1x32xf32, #tpu.memory_space<vmem>>, vector<1x32xf32>
    %16 = vector.broadcast %15 : vector<1x32xf32> to vector<16x32xf32>
    %17 = arith.addf %14, %16 : vector<16x32xf32>
    %cst_17 = arith.constant 0.000000e+00 : f32
    %18 = vector.broadcast %cst_17 : f32 to vector<16x32xf32>
    %19 = vector.extract_strided_slice %7 {offsets = [0, 0], sizes = [16, 8], strides = [1, 1]} : vector<16x32xf32> to vector<16x8xf32>
    %20 = arith.truncf %19 : vector<16x8xf32> to vector<16x8xbf16>
    %21 = vector.extract_strided_slice %12 {offsets = [0, 0], sizes = [16, 8], strides = [1, 1]} : vector<16x32xf32> to vector<16x8xf32>
    %22 = tpu.transpose %21, [1, 0] : vector<16x8xf32> -> vector<8x16xf32>
    %23 = arith.truncf %22 : vector<8x16xf32> to vector<8x16xbf16>
    %24 = vector.extract_strided_slice %17 {offsets = [0, 0], sizes = [16, 8], strides = [1, 1]} : vector<16x32xf32> to vector<16x8xf32>
    %25 = arith.truncf %24 : vector<16x8xf32> to vector<16x8xbf16>
    %cst_18 = arith.constant dense<0.000000e+00> : vector<16x16xf32>
    %26 = tpu.matmul %20, %23, %cst_18 {dimension_numbers = #tpu.dot_dimension_numbers<[1], [0], [0], [1], [0, 0, 1, 1], [], []>} : vector<16x8xbf16>, vector<8x16xbf16>, vector<16x16xf32> -> vector<16x16xf32>
    %cst_19 = arith.constant 0.353553385 : f32
    %27 = vector.broadcast %cst_19 : f32 to vector<16x16xf32>
    %28 = arith.mulf %26, %27 : vector<16x16xf32>
    %29 = arith.addf %28, %1 : vector<16x16xf32>
    %cst_20 = arith.constant dense<0xFF800000> : vector<16xf32>
    %30 = vector.multi_reduction <maximumf>, %29, %cst_20 [1] : vector<16x16xf32> to vector<16xf32>
    %31 = vector.shape_cast %30 : vector<16xf32> to vector<16x1xf32>
    %32 = vector.broadcast %31 : vector<16x1xf32> to vector<16x16xf32>
    %33 = arith.subf %29, %32 : vector<16x16xf32>
    %34 = math.exp %33 : vector<16x16xf32>
    %cst_21 = arith.constant dense<0.000000e+00> : vector<16xf32>
    %35 = vector.multi_reduction <add>, %34, %cst_21 [1] : vector<16x16xf32> to vector<16xf32>
    %36 = vector.shape_cast %35 : vector<16xf32> to vector<16x1xf32>
    %37 = tpu.reciprocal %36 {approx = true} : vector<16x1xf32> -> vector<16x1xf32>
    %38 = vector.broadcast %37 : vector<16x1xf32> to vector<16x16xf32>
    %39 = arith.mulf %34, %38 : vector<16x16xf32>
    %40 = arith.truncf %39 : vector<16x16xf32> to vector<16x16xbf16>
    %cst_22 = arith.constant dense<0.000000e+00> : vector<16x8xf32>
    %41 = tpu.matmul %40, %25, %cst_22 {dimension_numbers = #tpu.dot_dimension_numbers<[1], [0], [0], [1], [0, 0, 1, 1], [], []>} : vector<16x16xbf16>, vector<16x8xbf16>, vector<16x8xf32> -> vector<16x8xf32>
    %c0_23 = arith.constant 0 : index
    %c0_24 = arith.constant 0 : index
    %42 = vector.load %arg9[%c0_23, %c0_24] : memref<32x32xf32, #tpu.memory_space<vmem>>, vector<8x32xf32>
    %43 = arith.truncf %42 : vector<8x32xf32> to vector<8x32xbf16>
    %44 = arith.truncf %41 : vector<16x8xf32> to vector<16x8xbf16>
    %cst_25 = arith.constant dense<0.000000e+00> : vector<16x32xf32>
    %45 = tpu.matmul %44, %43, %cst_25 {dimension_numbers = #tpu.dot_dimension_numbers<[1], [0], [0], [1], [0, 0, 1, 1], [], []>} : vector<16x8xbf16>, vector<8x32xbf16>, vector<16x32xf32> -> vector<16x32xf32>
    %46 = arith.addf %18, %45 : vector<16x32xf32>
    %47 = vector.extract_strided_slice %7 {offsets = [0, 8], sizes = [16, 8], strides = [1, 1]} : vector<16x32xf32> to vector<16x8xf32>
    %48 = arith.truncf %47 : vector<16x8xf32> to vector<16x8xbf16>
    %49 = vector.extract_strided_slice %12 {offsets = [0, 8], sizes = [16, 8], strides = [1, 1]} : vector<16x32xf32> to vector<16x8xf32>
    %50 = tpu.transpose %49, [1, 0] : vector<16x8xf32> -> vector<8x16xf32>
    %51 = arith.truncf %50 : vector<8x16xf32> to vector<8x16xbf16>
    %52 = vector.extract_strided_slice %17 {offsets = [0, 8], sizes = [16, 8], strides = [1, 1]} : vector<16x32xf32> to vector<16x8xf32>
    %53 = arith.truncf %52 : vector<16x8xf32> to vector<16x8xbf16>
    %cst_26 = arith.constant dense<0.000000e+00> : vector<16x16xf32>
    %54 = tpu.matmul %48, %51, %cst_26 {dimension_numbers = #tpu.dot_dimension_numbers<[1], [0], [0], [1], [0, 0, 1, 1], [], []>} : vector<16x8xbf16>, vector<8x16xbf16>, vector<16x16xf32> -> vector<16x16xf32>
    %cst_27 = arith.constant 0.353553385 : f32
    %55 = vector.broadcast %cst_27 : f32 to vector<16x16xf32>
    %56 = arith.mulf %54, %55 : vector<16x16xf32>
    %57 = arith.addf %56, %1 : vector<16x16xf32>
    %cst_28 = arith.constant dense<0xFF800000> : vector<16xf32>
    %58 = vector.multi_reduction <maximumf>, %57, %cst_28 [1] : vector<16x16xf32> to vector<16xf32>
    %59 = vector.shape_cast %58 : vector<16xf32> to vector<16x1xf32>
    %60 = vector.broadcast %59 : vector<16x1xf32> to vector<16x16xf32>
    %61 = arith.subf %57, %60 : vector<16x16xf32>
    %62 = math.exp %61 : vector<16x16xf32>
    %cst_29 = arith.constant dense<0.000000e+00> : vector<16xf32>
    %63 = vector.multi_reduction <add>, %62, %cst_29 [1] : vector<16x16xf32> to vector<16xf32>
    %64 = vector.shape_cast %63 : vector<16xf32> to vector<16x1xf32>
    %65 = tpu.reciprocal %64 {approx = true} : vector<16x1xf32> -> vector<16x1xf32>
    %66 = vector.broadcast %65 : vector<16x1xf32> to vector<16x16xf32>
    %67 = arith.mulf %62, %66 : vector<16x16xf32>
    %68 = arith.truncf %67 : vector<16x16xf32> to vector<16x16xbf16>
    %cst_30 = arith.constant dense<0.000000e+00> : vector<16x8xf32>
    %69 = tpu.matmul %68, %53, %cst_30 {dimension_numbers = #tpu.dot_dimension_numbers<[1], [0], [0], [1], [0, 0, 1, 1], [], []>} : vector<16x16xbf16>, vector<16x8xbf16>, vector<16x8xf32> -> vector<16x8xf32>
    %c8 = arith.constant 8 : index
    %c0_31 = arith.constant 0 : index
    %70 = vector.load %arg9[%c8, %c0_31] : memref<32x32xf32, #tpu.memory_space<vmem>>, vector<8x32xf32>
    %71 = arith.truncf %70 : vector<8x32xf32> to vector<8x32xbf16>
    %72 = arith.truncf %69 : vector<16x8xf32> to vector<16x8xbf16>
    %cst_32 = arith.constant dense<0.000000e+00> : vector<16x32xf32>
    %73 = tpu.matmul %72, %71, %cst_32 {dimension_numbers = #tpu.dot_dimension_numbers<[1], [0], [0], [1], [0, 0, 1, 1], [], []>} : vector<16x8xbf16>, vector<8x32xbf16>, vector<16x32xf32> -> vector<16x32xf32>
    %74 = arith.addf %46, %73 : vector<16x32xf32>
    %75 = vector.extract_strided_slice %7 {offsets = [0, 16], sizes = [16, 8], strides = [1, 1]} : vector<16x32xf32> to vector<16x8xf32>
    %76 = arith.truncf %75 : vector<16x8xf32> to vector<16x8xbf16>
    %77 = vector.extract_strided_slice %12 {offsets = [0, 16], sizes = [16, 8], strides = [1, 1]} : vector<16x32xf32> to vector<16x8xf32>
    %78 = tpu.transpose %77, [1, 0] : vector<16x8xf32> -> vector<8x16xf32>
    %79 = arith.truncf %78 : vector<8x16xf32> to vector<8x16xbf16>
    %80 = vector.extract_strided_slice %17 {offsets = [0, 16], sizes = [16, 8], strides = [1, 1]} : vector<16x32xf32> to vector<16x8xf32>
    %81 = arith.truncf %80 : vector<16x8xf32> to vector<16x8xbf16>
    %cst_33 = arith.constant dense<0.000000e+00> : vector<16x16xf32>
    %82 = tpu.matmul %76, %79, %cst_33 {dimension_numbers = #tpu.dot_dimension_numbers<[1], [0], [0], [1], [0, 0, 1, 1], [], []>} : vector<16x8xbf16>, vector<8x16xbf16>, vector<16x16xf32> -> vector<16x16xf32>
    %cst_34 = arith.constant 0.353553385 : f32
    %83 = vector.broadcast %cst_34 : f32 to vector<16x16xf32>
    %84 = arith.mulf %82, %83 : vector<16x16xf32>
    %85 = arith.addf %84, %1 : vector<16x16xf32>
    %cst_35 = arith.constant dense<0xFF800000> : vector<16xf32>
    %86 = vector.multi_reduction <maximumf>, %85, %cst_35 [1] : vector<16x16xf32> to vector<16xf32>
    %87 = vector.shape_cast %86 : vector<16xf32> to vector<16x1xf32>
    %88 = vector.broadcast %87 : vector<16x1xf32> to vector<16x16xf32>
    %89 = arith.subf %85, %88 : vector<16x16xf32>
    %90 = math.exp %89 : vector<16x16xf32>
    %cst_36 = arith.constant dense<0.000000e+00> : vector<16xf32>
    %91 = vector.multi_reduction <add>, %90, %cst_36 [1] : vector<16x16xf32> to vector<16xf32>
    %92 = vector.shape_cast %91 : vector<16xf32> to vector<16x1xf32>
    %93 = tpu.reciprocal %92 {approx = true} : vector<16x1xf32> -> vector<16x1xf32>
    %94 = vector.broadcast %93 : vector<16x1xf32> to vector<16x16xf32>
    %95 = arith.mulf %90, %94 : vector<16x16xf32>
    %96 = arith.truncf %95 : vector<16x16xf32> to vector<16x16xbf16>
    %cst_37 = arith.constant dense<0.000000e+00> : vector<16x8xf32>
    %97 = tpu.matmul %96, %81, %cst_37 {dimension_numbers = #tpu.dot_dimension_numbers<[1], [0], [0], [1], [0, 0, 1, 1], [], []>} : vector<16x16xbf16>, vector<16x8xbf16>, vector<16x8xf32> -> vector<16x8xf32>
    %c16 = arith.constant 16 : index
    %c0_38 = arith.constant 0 : index
    %98 = vector.load %arg9[%c16, %c0_38] : memref<32x32xf32, #tpu.memory_space<vmem>>, vector<8x32xf32>
    %99 = arith.truncf %98 : vector<8x32xf32> to vector<8x32xbf16>
    %100 = arith.truncf %97 : vector<16x8xf32> to vector<16x8xbf16>
    %cst_39 = arith.constant dense<0.000000e+00> : vector<16x32xf32>
    %101 = tpu.matmul %100, %99, %cst_39 {dimension_numbers = #tpu.dot_dimension_numbers<[1], [0], [0], [1], [0, 0, 1, 1], [], []>} : vector<16x8xbf16>, vector<8x32xbf16>, vector<16x32xf32> -> vector<16x32xf32>
    %102 = arith.addf %74, %101 : vector<16x32xf32>
    %103 = vector.extract_strided_slice %7 {offsets = [0, 24], sizes = [16, 8], strides = [1, 1]} : vector<16x32xf32> to vector<16x8xf32>
    %104 = arith.truncf %103 : vector<16x8xf32> to vector<16x8xbf16>
    %105 = vector.extract_strided_slice %12 {offsets = [0, 24], sizes = [16, 8], strides = [1, 1]} : vector<16x32xf32> to vector<16x8xf32>
    %106 = tpu.transpose %105, [1, 0] : vector<16x8xf32> -> vector<8x16xf32>
    %107 = arith.truncf %106 : vector<8x16xf32> to vector<8x16xbf16>
    %108 = vector.extract_strided_slice %17 {offsets = [0, 24], sizes = [16, 8], strides = [1, 1]} : vector<16x32xf32> to vector<16x8xf32>
    %109 = arith.truncf %108 : vector<16x8xf32> to vector<16x8xbf16>
    %cst_40 = arith.constant dense<0.000000e+00> : vector<16x16xf32>
    %110 = tpu.matmul %104, %107, %cst_40 {dimension_numbers = #tpu.dot_dimension_numbers<[1], [0], [0], [1], [0, 0, 1, 1], [], []>} : vector<16x8xbf16>, vector<8x16xbf16>, vector<16x16xf32> -> vector<16x16xf32>
    %cst_41 = arith.constant 0.353553385 : f32
    %111 = vector.broadcast %cst_41 : f32 to vector<16x16xf32>
    %112 = arith.mulf %110, %111 : vector<16x16xf32>
    %113 = arith.addf %112, %1 : vector<16x16xf32>
    %cst_42 = arith.constant dense<0xFF800000> : vector<16xf32>
    %114 = vector.multi_reduction <maximumf>, %113, %cst_42 [1] : vector<16x16xf32> to vector<16xf32>
    %115 = vector.shape_cast %114 : vector<16xf32> to vector<16x1xf32>
    %116 = vector.broadcast %115 : vector<16x1xf32> to vector<16x16xf32>
    %117 = arith.subf %113, %116 : vector<16x16xf32>
    %118 = math.exp %117 : vector<16x16xf32>
    %cst_43 = arith.constant dense<0.000000e+00> : vector<16xf32>
    %119 = vector.multi_reduction <add>, %118, %cst_43 [1] : vector<16x16xf32> to vector<16xf32>
    %120 = vector.shape_cast %119 : vector<16xf32> to vector<16x1xf32>
    %121 = tpu.reciprocal %120 {approx = true} : vector<16x1xf32> -> vector<16x1xf32>
    %122 = vector.broadcast %121 : vector<16x1xf32> to vector<16x16xf32>
    %123 = arith.mulf %118, %122 : vector<16x16xf32>
    %124 = arith.truncf %123 : vector<16x16xf32> to vector<16x16xbf16>
    %cst_44 = arith.constant dense<0.000000e+00> : vector<16x8xf32>
    %125 = tpu.matmul %124, %109, %cst_44 {dimension_numbers = #tpu.dot_dimension_numbers<[1], [0], [0], [1], [0, 0, 1, 1], [], []>} : vector<16x16xbf16>, vector<16x8xbf16>, vector<16x8xf32> -> vector<16x8xf32>
    %c24 = arith.constant 24 : index
    %c0_45 = arith.constant 0 : index
    %126 = vector.load %arg9[%c24, %c0_45] : memref<32x32xf32, #tpu.memory_space<vmem>>, vector<8x32xf32>
    %127 = arith.truncf %126 : vector<8x32xf32> to vector<8x32xbf16>
    %128 = arith.truncf %125 : vector<16x8xf32> to vector<16x8xbf16>
    %cst_46 = arith.constant dense<0.000000e+00> : vector<16x32xf32>
    %129 = tpu.matmul %128, %127, %cst_46 {dimension_numbers = #tpu.dot_dimension_numbers<[1], [0], [0], [1], [0, 0, 1, 1], [], []>} : vector<16x8xbf16>, vector<8x32xbf16>, vector<16x32xf32> -> vector<16x32xf32>
    %130 = arith.addf %102, %129 : vector<16x32xf32>
    %c0_47 = arith.constant 0 : index
    %c0_48 = arith.constant 0 : index
    %131 = vector.load %arg10[%c0_47, %c0_48] : memref<1x32xf32, #tpu.memory_space<vmem>>, vector<1x32xf32>
    %132 = vector.broadcast %131 : vector<1x32xf32> to vector<16x32xf32>
    %133 = arith.addf %130, %132 : vector<16x32xf32>
    %c0_49 = arith.constant 0 : index
    %c0_50 = arith.constant 0 : index
    %134 = vector.load %arg15[%c0_49, %c0_50] : memref<1x32xf32, #tpu.memory_space<vmem>>, vector<1x32xf32>
    %c0_51 = arith.constant 0 : index
    %c0_52 = arith.constant 0 : index
    %135 = vector.load %arg16[%c0_51, %c0_52] : memref<1x32xf32, #tpu.memory_space<vmem>>, vector<1x32xf32>
    %136 = arith.addf %0, %133 : vector<16x32xf32>
    %cst_53 = arith.constant dense<0.000000e+00> : vector<16xf32>
    %137 = vector.multi_reduction <add>, %136, %cst_53 [1] : vector<16x32xf32> to vector<16xf32>
    %138 = vector.shape_cast %137 : vector<16xf32> to vector<16x1xf32>
    %cst_54 = arith.constant 3.200000e+01 : f32
    %139 = vector.broadcast %cst_54 : f32 to vector<16x1xf32>
    %140 = arith.divf %138, %139 : vector<16x1xf32>
    %141 = vector.broadcast %140 : vector<16x1xf32> to vector<16x32xf32>
    %142 = arith.subf %136, %141 : vector<16x32xf32>
    %143 = vector.broadcast %140 : vector<16x1xf32> to vector<16x32xf32>
    %144 = arith.subf %136, %143 : vector<16x32xf32>
    %145 = arith.mulf %142, %144 : vector<16x32xf32>
    %cst_55 = arith.constant dense<0.000000e+00> : vector<16xf32>
    %146 = vector.multi_reduction <add>, %145, %cst_55 [1] : vector<16x32xf32> to vector<16xf32>
    %147 = vector.shape_cast %146 : vector<16xf32> to vector<16x1xf32>
    %cst_56 = arith.constant 3.200000e+01 : f32
    %148 = vector.broadcast %cst_56 : f32 to vector<16x1xf32>
    %149 = arith.divf %147, %148 : vector<16x1xf32>
    %150 = vector.broadcast %140 : vector<16x1xf32> to vector<16x32xf32>
    %151 = arith.subf %136, %150 : vector<16x32xf32>
    %cst_57 = arith.constant 9.99999974E-6 : f32
    %152 = vector.broadcast %cst_57 : f32 to vector<16x1xf32>
    %153 = arith.addf %149, %152 : vector<16x1xf32>
    %154 = math.rsqrt %153 : vector<16x1xf32>
    %155 = vector.broadcast %154 : vector<16x1xf32> to vector<16x32xf32>
    %156 = arith.mulf %151, %155 : vector<16x32xf32>
    %157 = vector.broadcast %134 : vector<1x32xf32> to vector<16x32xf32>
    %158 = arith.mulf %156, %157 : vector<16x32xf32>
    %159 = vector.broadcast %135 : vector<1x32xf32> to vector<16x32xf32>
    %160 = arith.addf %158, %159 : vector<16x32xf32>
    %161 = arith.truncf %160 : vector<16x32xf32> to vector<16x32xbf16>
    %c0_58 = arith.constant 0 : index
    %c0_59 = arith.constant 0 : index
    %162 = vector.load %arg11[%c0_58, %c0_59] : memref<32x128xbf16, #tpu.memory_space<vmem>>, vector<32x128xbf16>
    %cst_60 = arith.constant dense<0.000000e+00> : vector<16x128xf32>
    %163 = tpu.matmul %161, %162, %cst_60 {dimension_numbers = #tpu.dot_dimension_numbers<[1], [0], [0], [1], [0, 0, 1, 1], [], []>} : vector<16x32xbf16>, vector<32x128xbf16>, vector<16x128xf32> -> vector<16x128xf32>
    %c0_61 = arith.constant 0 : index
    %c0_62 = arith.constant 0 : index
    %164 = vector.load %arg12[%c0_61, %c0_62] : memref<1x128xf32, #tpu.memory_space<vmem>>, vector<1x128xf32>
    %165 = vector.broadcast %164 : vector<1x128xf32> to vector<16x128xf32>
    %166 = arith.addf %163, %165 : vector<16x128xf32>
    %cst_63 = arith.constant 0.000000e+00 : f32
    %167 = vector.broadcast %cst_63 : f32 to vector<16x128xf32>
    %168 = arith.maximumf %166, %167 : vector<16x128xf32>
    %169 = arith.truncf %168 : vector<16x128xf32> to vector<16x128xbf16>
    %c0_64 = arith.constant 0 : index
    %c0_65 = arith.constant 0 : index
    %170 = vector.load %arg13[%c0_64, %c0_65] : memref<128x32xbf16, #tpu.memory_space<vmem>>, vector<128x32xbf16>
    %cst_66 = arith.constant dense<0.000000e+00> : vector<16x32xf32>
    %171 = tpu.matmul %169, %170, %cst_66 {dimension_numbers = #tpu.dot_dimension_numbers<[1], [0], [0], [1], [0, 0, 1, 1], [], []>} : vector<16x128xbf16>, vector<128x32xbf16>, vector<16x32xf32> -> vector<16x32xf32>
    %c0_67 = arith.constant 0 : index
    %c0_68 = arith.constant 0 : index
    %172 = vector.load %arg14[%c0_67, %c0_68] : memref<1x32xf32, #tpu.memory_space<vmem>>, vector<1x32xf32>
    %173 = vector.broadcast %172 : vector<1x32xf32> to vector<16x32xf32>
    %174 = arith.addf %171, %173 : vector<16x32xf32>
    %175 = arith.addf %160, %174 : vector<16x32xf32>
    %cst_69 = arith.constant dense<0.000000e+00> : vector<16xf32>
    %176 = vector.multi_reduction <add>, %175, %cst_69 [1] : vector<16x32xf32> to vector<16xf32>
    %177 = vector.shape_cast %176 : vector<16xf32> to vector<16x1xf32>
    %cst_70 = arith.constant 3.200000e+01 : f32
    %178 = vector.broadcast %cst_70 : f32 to vector<16x1xf32>
    %179 = arith.divf %177, %178 : vector<16x1xf32>
    %180 = vector.broadcast %179 : vector<16x1xf32> to vector<16x32xf32>
    %181 = arith.subf %175, %180 : vector<16x32xf32>
    %182 = vector.broadcast %179 : vector<16x1xf32> to vector<16x32xf32>
    %183 = arith.subf %175, %182 : vector<16x32xf32>
    %184 = arith.mulf %181, %183 : vector<16x32xf32>
    %cst_71 = arith.constant dense<0.000000e+00> : vector<16xf32>
    %185 = vector.multi_reduction <add>, %184, %cst_71 [1] : vector<16x32xf32> to vector<16xf32>
    %186 = vector.shape_cast %185 : vector<16xf32> to vector<16x1xf32>
    %cst_72 = arith.constant 3.200000e+01 : f32
    %187 = vector.broadcast %cst_72 : f32 to vector<16x1xf32>
    %188 = arith.divf %186, %187 : vector<16x1xf32>
    %189 = vector.broadcast %179 : vector<16x1xf32> to vector<16x32xf32>
    %190 = arith.subf %175, %189 : vector<16x32xf32>
    %cst_73 = arith.constant 9.99999974E-6 : f32
    %191 = vector.broadcast %cst_73 : f32 to vector<16x1xf32>
    %192 = arith.addf %188, %191 : vector<16x1xf32>
    %193 = math.rsqrt %192 : vector<16x1xf32>
    %194 = vector.broadcast %193 : vector<16x1xf32> to vector<16x32xf32>
    %195 = arith.mulf %190, %194 : vector<16x32xf32>
    %196 = vector.broadcast %134 : vector<1x32xf32> to vector<16x32xf32>
    %197 = arith.mulf %195, %196 : vector<16x32xf32>
    %198 = vector.broadcast %135 : vector<1x32xf32> to vector<16x32xf32>
    %199 = arith.addf %197, %198 : vector<16x32xf32>
    %c0_74 = arith.constant 0 : index
    %c0_75 = arith.constant 0 : index
    %200 = vector.load %arg17[%c0_74, %c0_75] : memref<16x32xf32, #tpu.memory_space<vmem>>, vector<16x32xf32>
    tpu.vector_store %arg17[%c0_74, %c0_75], %199 {strides = array<i32>} : memref<16x32xf32, #tpu.memory_space<vmem>>, vector<16x32xf32>,
    return
  }
  func.func @transform_0(%arg0: i32) -> (i32, i32) {
    %c0_i32 = arith.constant 0 : i32
    %c0_i32_0 = arith.constant 0 : i32
    %c0_i32_1 = arith.constant 0 : i32
    return %c0_i32, %c0_i32_0 : i32, i32
  }
  func.func @transform_1(%arg0: i32) -> (i32, i32) {
    %c0_i32 = arith.constant 0 : i32
    %c0_i32_0 = arith.constant 0 : i32
    %c0_i32_1 = arith.constant 0 : i32
    return %c0_i32, %c0_i32_0 : i32, i32
  }
  func.func @transform_2(%arg0: i32) -> (i32, i32) {
    %c0_i32 = arith.constant 0 : i32
    %c0_i32_0 = arith.constant 0 : i32
    %c0_i32_1 = arith.constant 0 : i32
    return %c0_i32, %c0_i32_0 : i32, i32
  }
  func.func @transform_3(%arg0: i32) -> (i32, i32) {
    %c0_i32 = arith.constant 0 : i32
    %c0_i32_0 = arith.constant 0 : i32
    %c0_i32_1 = arith.constant 0 : i32
    return %c0_i32, %c0_i32_0 : i32, i32
  }
  func.func @transform_4(%arg0: i32) -> (i32, i32) {
    %c0_i32 = arith.constant 0 : i32
    %c0_i32_0 = arith.constant 0 : i32
    %c0_i32_1 = arith.constant 0 : i32
    return %c0_i32, %c0_i32_0 : i32, i32
  }
  func.func @transform_5(%arg0: i32) -> (i32, i32) {
    %c0_i32 = arith.constant 0 : i32
    %c0_i32_0 = arith.constant 0 : i32
    %c0_i32_1 = arith.constant 0 : i32
    return %c0_i32, %c0_i32_0 : i32, i32
  }
  func.func @transform_6(%arg0: i32) -> (i32, i32) {
    %c0_i32 = arith.constant 0 : i32
    %c0_i32_0 = arith.constant 0 : i32
    %c0_i32_1 = arith.constant 0 : i32
    return %c0_i32, %c0_i32_0 : i32, i32
  }
  func.func @transform_7(%arg0: i32) -> (i32, i32) {
    %c0_i32 = arith.constant 0 : i32
    %c0_i32_0 = arith.constant 0 : i32
    %c0_i32_1 = arith.constant 0 : i32
    return %c0_i32, %c0_i32_0 : i32, i32
  }
  func.func @transform_8(%arg0: i32) -> (i32, i32) {
    %c0_i32 = arith.constant 0 : i32
    %c0_i32_0 = arith.constant 0 : i32
    %c0_i32_1 = arith.constant 0 : i32
    return %c0_i32, %c0_i32_0 : i32, i32
  }
  func.func @transform_9(%arg0: i32) -> (i32, i32) {
    %c0_i32 = arith.constant 0 : i32
    %c0_i32_0 = arith.constant 0 : i32
    %c0_i32_1 = arith.constant 0 : i32
    return %c0_i32, %c0_i32_0 : i32, i32
  }
  func.func @transform_10(%arg0: i32) -> (i32, i32) {
    %c0_i32 = arith.constant 0 : i32
    %c0_i32_0 = arith.constant 0 : i32
    %c0_i32_1 = arith.constant 0 : i32
    return %c0_i32, %c0_i32_0 : i32, i32
  }
  func.func @transform_11(%arg0: i32) -> (i32, i32) {
    %c0_i32 = arith.constant 0 : i32
    %c0_i32_0 = arith.constant 0 : i32
    %c0_i32_1 = arith.constant 0 : i32
    return %c0_i32, %c0_i32_0 : i32, i32
  }
  func.func @transform_12(%arg0: i32) -> (i32, i32) {
    %c0_i32 = arith.constant 0 : i32
    %c0_i32_0 = arith.constant 0 : i32
    %c0_i32_1 = arith.constant 0 : i32
    return %c0_i32, %c0_i32_0 : i32, i32
  }
  func.func @transform_13(%arg0: i32) -> (i32, i32) {
    %c0_i32 = arith.constant 0 : i32
    %c0_i32_0 = arith.constant 0 : i32
    %c0_i32_1 = arith.constant 0 : i32
    return %c0_i32, %c0_i32_0 : i32, i32
  }
  func.func @transform_14(%arg0: i32) -> (i32, i32) {
    %c0_i32 = arith.constant 0 : i32
    %c0_i32_0 = arith.constant 0 : i32
    %c0_i32_1 = arith.constant 0 : i32
    return %c0_i32, %c0_i32_0 : i32, i32
  }
  func.func @transform_15(%arg0: i32) -> (i32, i32) {
    %c0_i32 = arith.constant 0 : i32
    %c0_i32_0 = arith.constant 0 : i32
    %c0_i32_1 = arith.constant 0 : i32
    return %c0_i32, %c0_i32_0 : i32, i32
  }
  func.func @transform_16(%arg0: i32) -> (i32, i32) {
    %c0_i32 = arith.constant 0 : i32
    %c0_i32_0 = arith.constant 0 : i32
    %c0_i32_1 = arith.constant 0 : i32
    return %c0_i32, %c0_i32_0 : i32, i32
  }
}

</mosaic_0001>

<llo_original>
// kernel: tpu_custom_call.1
$region0: #{tpu_custom_call.1}
  #allocation0 [shape = 'u32[]', space=smem, size = 0x4, offset = 0x4, fixed_abs, tag = 'smem constant byte address 0x4 - core index']
  #allocation1 [shape = 'u32[72,128]{1,0:T(1,128)}', space=vmem, size = 0x9000, scoped, tag = 'internal scratch']
  %s0 = inlined_call_operand.vmem [shape: f32[16,32], index: 0, kind: input, shape index: {}]
  %s1 = inlined_call_operand.vmem [shape: f32[16,16], index: 1, kind: input, shape index: {}]
  %s2 = inlined_call_operand.vmem [shape: bf16[32,32], index: 2, kind: input, shape index: {}]
  %s3 = inlined_call_operand.vmem [shape: f32[1,32], index: 3, kind: input, shape index: {}]
  %s4 = inlined_call_operand.hbm [shape: bf16[32,32], index: 4, kind: input, shape index: {}]
  %s5 = inlined_call_operand.vmem [shape: f32[1,32], index: 5, kind: input, shape index: {}]
  %s6 = inlined_call_operand.hbm [shape: bf16[32,32], index: 6, kind: input, shape index: {}]
  %s7 = inlined_call_operand.vmem [shape: f32[1,32], index: 7, kind: input, shape index: {}]
  %s8 = inlined_call_operand.vmem [shape: f32[32,32], index: 8, kind: input, shape index: {}]
  %s9 = inlined_call_operand.vmem [shape: f32[1,32], index: 9, kind: input, shape index: {}]
  %s10 = inlined_call_operand.hbm [shape: bf16[32,128], index: 10, kind: input, shape index: {}]
  %s11 = inlined_call_operand.vmem [shape: f32[1,128], index: 11, kind: input, shape index: {}]
  %s12 = inlined_call_operand.vmem [shape: bf16[128,32], index: 12, kind: input, shape index: {}]
  %s13 = inlined_call_operand.vmem [shape: f32[1,32], index: 13, kind: input, shape index: {}]
  %s14 = inlined_call_operand.vmem [shape: f32[1,32], index: 14, kind: input, shape index: {}]
  %s15 = inlined_call_operand.vmem [shape: f32[1,32], index: 15, kind: input, shape index: {}]
  %s16 = inlined_call_operand.hbm [shape: f32[16,32], index: 16, kind: output, shape index: {}]
  %s17 = sld [smem:[#allocation0]]
  $region86: #{tpu_custom_call.1} parent=0
    _
  %s19 = ssub.s32 1, %s17
  %s20 = scalar_select 0, %s19, %s17
  $region1: #{tpu_custom_call.1} parent=0
    #allocation2 [shape = 'u8[8192]{0}', space=vmem, size = 0x2000, scoped, tag = 'input window, operand 4, single buffered']
    #allocation3 [shape = 's32[1]{0}', space=sflag, size = 0x4, scoped, tag = 'scoped memory for tpu_custom_call.1']
    #allocation4 [shape = 's32[1]{0}', space=sflag, size = 0x4, scoped, tag = 'scoped memory for tpu_custom_call.1']
    #allocation5 [shape = 'u8[8192]{0}', space=vmem, size = 0x2000, scoped, tag = 'input window, operand 6, single buffered']
    #allocation6 [shape = 's32[1]{0}', space=sflag, size = 0x4, scoped, tag = 'scoped memory for tpu_custom_call.1']
    #allocation7 [shape = 'u8[8192]{0}', space=vmem, size = 0x2000, scoped, tag = 'input window, operand 10, single buffered']
    #allocation8 [shape = 'u8[8192]{0}', space=vmem, size = 0x2000, scoped, tag = 'output window, operand 0, single buffered']
    %21 = vsyncpa [#allocation3], 0
    %22 = vsyncpa [#allocation6], 0
    %23 = vsyncpa [#allocation4], 0
    // Predicated region
    $region2: #{tpu_custom_call.1} parent=1 // pred_check
      _
    $region3: #{tpu_custom_call.1} parent=1 // pred_check_branch
      %25 = sbr.rel (0) target = $region5
    $region4: #{tpu_custom_call.1} parent=1 // pred_region
      _
    $region5: #{tpu_custom_call.1} parent=1 // pred_fallthru
      _
    // Predicated region
    $region6: #{tpu_custom_call.1} parent=1 // pred_check
      _
    $region7: #{tpu_custom_call.1} parent=1 // pred_check_branch
      %27 = sbr.rel (0) target = $region9
    $region8: #{tpu_custom_call.1} parent=1 // pred_region
      _
    $region9: #{tpu_custom_call.1} parent=1 // pred_fallthru
      _
    // Predicated region
    $region10: #{tpu_custom_call.1} parent=1 // pred_check
      _
    $region11: #{tpu_custom_call.1} parent=1 // pred_check_branch
      %29 = sbr.rel (0) target = $region13
    $region12: #{tpu_custom_call.1} parent=1 // pred_region
      _
    $region13: #{tpu_custom_call.1} parent=1 // pred_fallthru
      _
    // Predicated region
    $region14: #{tpu_custom_call.1} parent=1 // pred_check
      _
    $region15: #{tpu_custom_call.1} parent=1 // pred_check_branch
      %31 = sbr.rel (0) target = $region17
    $region16: #{tpu_custom_call.1} parent=1 // pred_region
      _
    $region17: #{tpu_custom_call.1} parent=1 // pred_fallthru
      _
    // Predicated region
    $region18: #{tpu_custom_call.1} parent=1 // pred_check
      _
    $region19: #{tpu_custom_call.1} parent=1 // pred_check_branch
      %33 = sbr.rel (0) target = $region21
    $region20: #{tpu_custom_call.1} parent=1 // pred_region
      %35 = vsyncadd [#allocation3], 0
      %s36 = sshll.u32 %s4, 4
      %s37 = int_to_ptr.hbm [resolvable:$true] %s36
      %s38 = sshll.u32 [#allocation2], 4
      %s39 = int_to_ptr.vmem [resolvable:$true] %s38
      %44 = dma.hbm_to_vmem [thread:$0]  %s37, 256, %s39, [#allocation3], 64, 64, 4
    $region21: #{tpu_custom_call.1} parent=1 // pred_fallthru
      _
    // Predicated region
    $region22: #{tpu_custom_call.1} parent=1 // pred_check
      _
    $region23: #{tpu_custom_call.1} parent=1 // pred_check_branch
      %46 = sbr.rel (0) target = $region25
    $region24: #{tpu_custom_call.1} parent=1 // pred_region
      _
    $region25: #{tpu_custom_call.1} parent=1 // pred_fallthru
      _
    // Predicated region
    $region26: #{tpu_custom_call.1} parent=1 // pred_check
      _
    $region27: #{tpu_custom_call.1} parent=1 // pred_check_branch
      %48 = sbr.rel (0) target = $region29
    $region28: #{tpu_custom_call.1} parent=1 // pred_region
      %50 = vsyncadd [#allocation6], 0
      %s51 = sshll.u32 %s6, 4
      %s52 = int_to_ptr.hbm [resolvable:$true] %s51
      %s53 = sshll.u32 [#allocation5], 4
      %s54 = int_to_ptr.vmem [resolvable:$true] %s53
      %59 = dma.hbm_to_vmem [thread:$0]  %s52, 256, %s54, [#allocation6], 64, 64, 4
    $region29: #{tpu_custom_call.1} parent=1 // pred_fallthru
      _
    // Predicated region
    $region30: #{tpu_custom_call.1} parent=1 // pred_check
      _
    $region31: #{tpu_custom_call.1} parent=1 // pred_check_branch
      %61 = sbr.rel (0) target = $region33
    $region32: #{tpu_custom_call.1} parent=1 // pred_region
      _
    $region33: #{tpu_custom_call.1} parent=1 // pred_fallthru
      _
    // Predicated region
    $region34: #{tpu_custom_call.1} parent=1 // pred_check
      _
    $region35: #{tpu_custom_call.1} parent=1 // pred_check_branch
      %63 = sbr.rel (0) target = $region37
    $region36: #{tpu_custom_call.1} parent=1 // pred_region
      _
    $region37: #{tpu_custom_call.1} parent=1 // pred_fallthru
      _
    // Predicated region
    $region38: #{tpu_custom_call.1} parent=1 // pred_check
      _
    $region39: #{tpu_custom_call.1} parent=1 // pred_check_branch
      %65 = sbr.rel (0) target = $region41
    $region40: #{tpu_custom_call.1} parent=1 // pred_region
      _
    $region41: #{tpu_custom_call.1} parent=1 // pred_fallthru
      _
    // Predicated region
    $region42: #{tpu_custom_call.1} parent=1 // pred_check
      _
    $region43: #{tpu_custom_call.1} parent=1 // pred_check_branch
      %67 = sbr.rel (0) target = $region45
    $region44: #{tpu_custom_call.1} parent=1 // pred_region
      %69 = vsyncadd [#allocation6], 0
      %s70 = sshll.u32 %s10, 4
      %s71 = int_to_ptr.hbm [resolvable:$true] %s70
      %s72 = sshll.u32 [#allocation7], 4
      %s73 = int_to_ptr.vmem [resolvable:$true] %s72
      %78 = dma.hbm_to_vmem [thread:$0]  %s71, 256, %s73, [#allocation6], 64, 64, 4
    $region45: #{tpu_custom_call.1} parent=1 // pred_fallthru
      _
    // Predicated region
    $region46: #{tpu_custom_call.1} parent=1 // pred_check
      _
    $region47: #{tpu_custom_call.1} parent=1 // pred_check_branch
      %80 = sbr.rel (0) target = $region49
    $region48: #{tpu_custom_call.1} parent=1 // pred_region
      _
    $region49: #{tpu_custom_call.1} parent=1 // pred_fallthru
      _
    // Predicated region
    $region50: #{tpu_custom_call.1} parent=1 // pred_check
      _
    $region51: #{tpu_custom_call.1} parent=1 // pred_check_branch
      %82 = sbr.rel (0) target = $region53
    $region52: #{tpu_custom_call.1} parent=1 // pred_region
      _
    $region53: #{tpu_custom_call.1} parent=1 // pred_fallthru
      _
    // Predicated region
    $region54: #{tpu_custom_call.1} parent=1 // pred_check
      _
    $region55: #{tpu_custom_call.1} parent=1 // pred_check_branch
      %84 = sbr.rel (0) target = $region57
    $region56: #{tpu_custom_call.1} parent=1 // pred_region
      _
    $region57: #{tpu_custom_call.1} parent=1 // pred_fallthru
      _
    // Predicated region
    $region58: #{tpu_custom_call.1} parent=1 // pred_check
      _
    $region59: #{tpu_custom_call.1} parent=1 // pred_check_branch
      %86 = sbr.rel (0) target = $region61
    $region60: #{tpu_custom_call.1} parent=1 // pred_region
      _
    $region61: #{tpu_custom_call.1} parent=1 // pred_fallthru
      _
    // Predicated region
    $region62: #{tpu_custom_call.1} parent=1 // pred_check
      _
    $region63: #{tpu_custom_call.1} parent=1 // pred_check_branch
      %88 = sbr.rel (0) target = $region65
    $region64: #{tpu_custom_call.1} parent=1 // pred_region
      _
    $region65: #{tpu_custom_call.1} parent=1 // pred_fallthru
      _
    // Predicated region
    $region66: #{tpu_custom_call.1} parent=1 // pred_check
      _
    $region67: #{tpu_custom_call.1} parent=1 // pred_check_branch
      %90 = sbr.rel (0) target = $region69
    $region68: #{tpu_custom_call.1} parent=1 // pred_region
      %92 = dma.done [#allocation3], 256
    $region69: #{tpu_custom_call.1} parent=1 // pred_fallthru
      _
    // Predicated region
    $region70: #{tpu_custom_call.1} parent=1 // pred_check
      _
    $region71: #{tpu_custom_call.1} parent=1 // pred_check_branch
      %94 = sbr.rel (0) target = $region73
    $region72: #{tpu_custom_call.1} parent=1 // pred_region
      %96 = dma.done [#allocation6], 256
    $region73: #{tpu_custom_call.1} parent=1 // pred_fallthru
      _
    // Predicated region
    $region74: #{tpu_custom_call.1} parent=1 // pred_check
      _
    $region75: #{tpu_custom_call.1} parent=1 // pred_check_branch
      %98 = sbr.rel (0) target = $region77
    $region76: #{tpu_custom_call.1} parent=1 // pred_region
      %100 = dma.done [#allocation6], 256
    $region77: #{tpu_custom_call.1} parent=1 // pred_fallthru
      _
    %v102 = vld [vmem:[%s0] sm:$0xff]
    %v103 = vld [vmem:[%s0 + $0x8] sm:$0xff]
    %v104 = vld [vmem:[%s1] sm:$0xff]
    %v105 = vld [vmem:[%s1 + $0x8] sm:$0xff]
    %v106 = vpack.c.bf16 %v103, %v102
    %v107 = vld [vmem:[%s2] sm:$0xf]
    %v108 = vld [vmem:[%s2 + $0x4] sm:$0xf]
    %v109 = vld [vmem:[%s2 + $0x8] sm:$0xf]
    %v110 = vld [vmem:[%s2 + $0xc] sm:$0xf]
    %v111 = vld [vmem:[%s3] sm:$0x1]
    %v113 = vperm.slane %v111, 0
    %v119 = vunpack.c.l.b16 %v107
    %v120 = vunpack.c.l.b16 %v108
    %v121 = vunpack.c.l.b16 %v109
    %v122 = vunpack.c.l.b16 %v110
    %v123 = vpack.c.b16 %v120, %v119
    %v124 = vpack.c.b16 %v122, %v121
    %vm127 = vcmask 261120
    %v129 = vsel %vm127, %v106, 0
    %131 = vmatpush.bf16.msra.mxu0 0
    %132 = vmatpush.bf16.msra.mxu0 0
    %133 = vmatpush.bf16.msra.mxu0 0
    %134 = vmatpush.bf16.msra.mxu0 0
    %135 = vmatpush.bf16.msra.mxu0 0
    %136 = vmatpush.bf16.msra.mxu0 0
    %137 = vmatpush.bf16.msra.mxu0 %v124
    %138 = vmatpush.bf16.msra.mxu0 %v123
    %139 = vmatmul.bf16.gmra.mxu0 %v129
    %v140 = vpop.f32.mrf.mxu0
    %v141 = vadd.f32 %v113, %v140
    %v142 = vpop.f32.mrf.mxu0
    %v143 = vadd.f32 %v113, %v142
    %144 = vdwg.mxu0
    %v145 = vld [vmem:[#allocation2] sm:$0xf]
    %v146 = vld [vmem:[#allocation2 + $0x4] sm:$0xf]
    %v147 = vld [vmem:[#allocation2 + $0x8] sm:$0xf]
    %v148 = vld [vmem:[#allocation2 + $0xc] sm:$0xf]
    %v149 = vld [vmem:[%s5] sm:$0x1]
    %v151 = vperm.slane %v149, 0
    %v157 = vunpack.c.l.b16 %v145
    %v158 = vunpack.c.l.b16 %v146
    %v159 = vunpack.c.l.b16 %v147
    %v160 = vunpack.c.l.b16 %v148
    %v161 = vpack.c.b16 %v158, %v157
    %v162 = vpack.c.b16 %v160, %v159
    %165 = vmatpush.bf16.msra.mxu0 0
    %166 = vmatpush.bf16.msra.mxu0 0
    %167 = vmatpush.bf16.msra.mxu0 0
    %168 = vmatpush.bf16.msra.mxu0 0
    %169 = vmatpush.bf16.msra.mxu0 0
    %170 = vmatpush.bf16.msra.mxu0 0
    %171 = vmatpush.bf16.msra.mxu0 %v162
    %172 = vmatpush.bf16.msra.mxu0 %v161
    %173 = vmatmul.bf16.gmra.mxu0 %v129
    %v174 = vpop.f32.mrf.mxu0
    %v175 = vadd.f32 %v151, %v174
    %v176 = vpop.f32.mrf.mxu0
    %v177 = vadd.f32 %v151, %v176
    %178 = vdwg.mxu0
    %v179 = vld [vmem:[#allocation5] sm:$0xf]
    %v180 = vld [vmem:[#allocation5 + $0x4] sm:$0xf]
    %v181 = vld [vmem:[#allocation5 + $0x8] sm:$0xf]
    %v182 = vld [vmem:[#allocation5 + $0xc] sm:$0xf]
    %v183 = vld [vmem:[%s7] sm:$0x1]
    %v185 = vperm.slane %v183, 0
    %v191 = vunpack.c.l.b16 %v179
    %v192 = vunpack.c.l.b16 %v180
    %v193 = vunpack.c.l.b16 %v181
    %v194 = vunpack.c.l.b16 %v182
    %v195 = vpack.c.b16 %v192, %v191
    %v196 = vpack.c.b16 %v194, %v193
    %199 = vmatpush.bf16.msra.mxu0 0
    %200 = vmatpush.bf16.msra.mxu0 0
    %201 = vmatpush.bf16.msra.mxu0 0
    %202 = vmatpush.bf16.msra.mxu0 0
    %203 = vmatpush.bf16.msra.mxu0 0
    %204 = vmatpush.bf16.msra.mxu0 0
    %205 = vmatpush.bf16.msra.mxu0 %v196
    %206 = vmatpush.bf16.msra.mxu0 %v195
    %207 = vmatmul.bf16.gmra.mxu0 %v129
    %v208 = vpop.f32.mrf.mxu0
    %v209 = vadd.f32 %v185, %v208
    %v210 = vpop.f32.mrf.mxu0
    %v211 = vadd.f32 %v185, %v210
    %212 = vdwg.mxu0
    %v213 = vpack.c.bf16 %v143, %v141
    %214 = vxpose.xlu0.b32.start [1/16] %v175, 128
    %215 = vxpose.xlu0.b32.cont [2/16] %v177, 128
    %216 = vxpose.xlu0.b32.cont [3/16] 0.0, 128
    %217 = vxpose.xlu0.b32.cont [4/16] 0.0, 128
    %218 = vxpose.xlu0.b32.cont [5/16] 0.0, 128
    %219 = vxpose.xlu0.b32.cont [6/16] 0.0, 128
    %220 = vxpose.xlu0.b32.cont [7/16] 0.0, 128
    %221 = vxpose.xlu0.b32.cont [8/16] 0.0, 128
    %222 = vxpose.xlu0.b32.cont [9/16] 0.0, 128
    %223 = vxpose.xlu0.b32.cont [10/16] 0.0, 128
    %224 = vxpose.xlu0.b32.cont [11/16] 0.0, 128
    %225 = vxpose.xlu0.b32.cont [12/16] 0.0, 128
    %226 = vxpose.xlu0.b32.cont [13/16] 0.0, 128
    %227 = vxpose.xlu0.b32.cont [14/16] 0.0, 128
    %228 = vxpose.xlu0.b32.cont [15/16] 0.0, 128
    %229 = vxpose.xlu0.b32.end [16/16] 0.0, 128
    %v230 = vpop.trf.xlu0
    %v231 = vpop.trf.xlu0
    %v232 = vpop.trf.xlu0
    %v233 = vpop.trf.xlu0
    %v234 = vpop.trf.xlu0
    %v235 = vpop.trf.xlu0
    %v236 = vpop.trf.xlu0
    %v237 = vpop.trf.xlu0
    %v238 = vpop.trf.xlu0
    %v239 = vpop.trf.xlu0
    %v240 = vpop.trf.xlu0
    %v241 = vpop.trf.xlu0
    %v242 = vpop.trf.xlu0
    %v243 = vpop.trf.xlu0
    %v244 = vpop.trf.xlu0
    %v245 = vpop.trf.xlu0
    %v246 = vpack.c.bf16 %v230, %v230
    %v247 = vpack.c.bf16 %v211, %v209
    %vm248 = vcmask 64512
    %v250 = vsel %vm248, %v213, 0
    %vm252 = vcmask 1043456
    %v254 = vsel %vm252, %v246, 0
    %256 = vmatpush.bf16.msra.mxu0 0
    %257 = vmatpush.bf16.msra.mxu0 0
    %258 = vmatpush.bf16.msra.mxu0 0
    %259 = vmatpush.bf16.msra.mxu0 0
    %260 = vmatpush.bf16.msra.mxu0 0
    %261 = vmatpush.bf16.msra.mxu0 0
    %262 = vmatpush.bf16.msra.mxu0 0
    %263 = vmatpush.bf16.msra.mxu0 %v254
    %264 = vmatmul.bf16.gmra.mxu0 %v250
    %v265 = vpop.f32.mrf.mxu0
    %v266 = vadd.f32 0.0, %v265
    %v267 = vpop.f32.mrf.mxu0
    %v268 = vadd.f32 0.0, %v267
    %269 = vdwg.mxu0
    %v270 = vmul.f32 %v266, 0.35355338
    %v271 = vmul.f32 %v268, 0.35355338
    %v272 = vadd.f32 %v270, %v104
    %v273 = vadd.f32 %v271, %v105
    %vm274 = vcmask 130048
    %v275 = vsel %vm274, %v272, -inf
    %276 = vmax.xlane.f32.xlu0 %v275
    %v277 = vpop.xlane.xlu0 %276
    %v278 = vsel %vm274, %v273, -inf
    %279 = vmax.xlane.f32.xlu0 %v278
    %v280 = vpop.xlane.xlu0 %279
    %v281 = vsub.f32 %v272, %v277
    %v282 = vsub.f32 %v273, %v280
    %v283 = vmul.f32 %v281, 1.442695
    %v284 = vpow.pop %v283
    %v285 = vmul.f32 %v282, 1.442695
    %v286 = vpow.pop %v285
    %v287 = vsel %vm274, %v284, 0.0
    %288 = vadd.xlane.f32.xlu0 %v287
    %v289 = vpop.xlane.xlu0 %288
    %v290 = vsel %vm274, %v286, 0.0
    %291 = vadd.xlane.f32.xlu0 %v290
    %v292 = vpop.xlane.xlu0 %291
    %v293 = vrcp.pop %v289
    %v294 = vrcp.pop %v292
    %v295 = vmul.f32 %v284, %v293
    %v296 = vmul.f32 %v286, %v294
    %v297 = vpack.c.bf16 %v296, %v295
    %v299 = vsel %vm274, %v297, 0
    %301 = vmatpush.bf16.msra.mxu0 0
    %302 = vmatpush.bf16.msra.mxu0 0
    %303 = vmatpush.bf16.msra.mxu0 0
    %304 = vmatpush.bf16.msra.mxu0 0
    %305 = vmatpush.bf16.msra.mxu0 0
    %306 = vmatpush.bf16.msra.mxu0 0
    %307 = vmatpush.bf16.msra.mxu0 0
    %308 = vmatpush.bf16.msra.mxu0 %v247
    %309 = vmatmul.bf16.gmra.mxu0 %v299
    %v310 = vpop.f32.mrf.mxu0
    %v311 = vadd.f32 0.0, %v310
    %v312 = vpop.f32.mrf.mxu0
    %v313 = vadd.f32 0.0, %v312
    %314 = vdwg.mxu0
    %v315 = vld [vmem:[%s8] sm:$0xff]
    %v316 = vpack.c.bf16 %v315, %v315
    %v317 = vpack.c.bf16 %v313, %v311
    %320 = vrot.lane.b32.xlu0 %v175, 120
    %v321 = vpop.permute.xlu0 %320
    %322 = vrot.lane.b32.xlu0 %v177, 120
    %v323 = vpop.permute.xlu0 %322
    %326 = vxpose.xlu0.b32.start [1/16] %v321, 128
    %327 = vxpose.xlu0.b32.cont [2/16] %v323, 128
    %328 = vxpose.xlu0.b32.cont [3/16] 0.0, 128
    %329 = vxpose.xlu0.b32.cont [4/16] 0.0, 128
    %330 = vxpose.xlu0.b32.cont [5/16] 0.0, 128
    %331 = vxpose.xlu0.b32.cont [6/16] 0.0, 128
    %332 = vxpose.xlu0.b32.cont [7/16] 0.0, 128
    %333 = vxpose.xlu0.b32.cont [8/16] 0.0, 128
    %334 = vxpose.xlu0.b32.cont [9/16] 0.0, 128
    %335 = vxpose.xlu0.b32.cont [10/16] 0.0, 128
    %336 = vxpose.xlu0.b32.cont [11/16] 0.0, 128
    %337 = vxpose.xlu0.b32.cont [12/16] 0.0, 128
    %338 = vxpose.xlu0.b32.cont [13/16] 0.0, 128
    %339 = vxpose.xlu0.b32.cont [14/16] 0.0, 128
    %340 = vxpose.xlu0.b32.cont [15/16] 0.0, 128
    %341 = vxpose.xlu0.b32.end [16/16] 0.0, 128
    %v342 = vpop.trf.xlu0
    %v343 = vpop.trf.xlu0
    %v344 = vpop.trf.xlu0
    %v345 = vpop.trf.xlu0
    %v346 = vpop.trf.xlu0
    %v347 = vpop.trf.xlu0
    %v348 = vpop.trf.xlu0
    %v349 = vpop.trf.xlu0
    %v350 = vpop.trf.xlu0
    %v351 = vpop.trf.xlu0
    %v352 = vpop.trf.xlu0
    %v353 = vpop.trf.xlu0
    %v354 = vpop.trf.xlu0
    %v355 = vpop.trf.xlu0
    %v356 = vpop.trf.xlu0
    %v357 = vpop.trf.xlu0
    %v358 = vpack.c.bf16 %v342, %v342
    %360 = vrot.lane.b32.xlu0 %v213, 120
    %v361 = vpop.permute.xlu0 %360
    %v363 = vsel %vm248, %v361, 0
    %v366 = vsel %vm252, %v358, 0
    %368 = vmatpush.bf16.msra.mxu0 0
    %369 = vmatpush.bf16.msra.mxu0 0
    %370 = vmatpush.bf16.msra.mxu0 0
    %371 = vmatpush.bf16.msra.mxu0 0
    %372 = vmatpush.bf16.msra.mxu0 0
    %373 = vmatpush.bf16.msra.mxu0 0
    %374 = vmatpush.bf16.msra.mxu0 0
    %375 = vmatpush.bf16.msra.mxu0 %v366
    %376 = vmatmul.bf16.gmra.mxu0 %v363
    %v377 = vpop.f32.mrf.mxu0
    %v378 = vadd.f32 0.0, %v377
    %v379 = vpop.f32.mrf.mxu0
    %v380 = vadd.f32 0.0, %v379
    %381 = vdwg.mxu0
    %v382 = vmul.f32 %v378, 0.35355338
    %v383 = vmul.f32 %v380, 0.35355338
    %v384 = vadd.f32 %v382, %v104
    %v385 = vadd.f32 %v383, %v105
    %v386 = vsel %vm274, %v384, -inf
    %387 = vmax.xlane.f32.xlu0 %v386
    %v388 = vpop.xlane.xlu0 %387
    %v389 = vsel %vm274, %v385, -inf
    %390 = vmax.xlane.f32.xlu0 %v389
    %v391 = vpop.xlane.xlu0 %390
    %v392 = vsub.f32 %v384, %v388
    %v393 = vsub.f32 %v385, %v391
    %v394 = vmul.f32 %v392, 1.442695
    %v395 = vpow.pop %v394
    %v396 = vmul.f32 %v393, 1.442695
    %v397 = vpow.pop %v396
    %v398 = vsel %vm274, %v395, 0.0
    %399 = vadd.xlane.f32.xlu0 %v398
    %v400 = vpop.xlane.xlu0 %399
    %v401 = vsel %vm274, %v397, 0.0
    %402 = vadd.xlane.f32.xlu0 %v401
    %v403 = vpop.xlane.xlu0 %402
    %v404 = vrcp.pop %v400
    %v405 = vrcp.pop %v403
    %v406 = vmul.f32 %v395, %v404
    %v407 = vmul.f32 %v397, %v405
    %v408 = vpack.c.bf16 %v407, %v406
    %410 = vrot.lane.b32.xlu0 %v247, 120
    %v411 = vpop.permute.xlu0 %410
    %v414 = vsel %vm274, %v408, 0
    %416 = vmatpush.bf16.msra.mxu0 0
    %417 = vmatpush.bf16.msra.mxu0 0
    %418 = vmatpush.bf16.msra.mxu0 0
    %419 = vmatpush.bf16.msra.mxu0 0
    %420 = vmatpush.bf16.msra.mxu0 0
    %421 = vmatpush.bf16.msra.mxu0 0
    %422 = vmatpush.bf16.msra.mxu0 0
    %423 = vmatpush.bf16.msra.mxu0 %v411
    %424 = vmatmul.bf16.gmra.mxu0 %v414
    %v425 = vpop.f32.mrf.mxu0
    %v426 = vadd.f32 0.0, %v425
    %v427 = vpop.f32.mrf.mxu0
    %v428 = vadd.f32 0.0, %v427
    %429 = vdwg.mxu0
    %v430 = vld [vmem:[%s8 + $0x8] sm:$0xff]
    %v431 = vpack.c.bf16 %v430, %v430
    %v432 = vpack.c.bf16 %v428, %v426
    %v434 = vsel %vm248, %v432, 0
    %v437 = vsel %vm252, %v431, 0
    %439 = vmatpush.bf16.msra.mxu0 0
    %440 = vmatpush.bf16.msra.mxu0 0
    %441 = vmatpush.bf16.msra.mxu0 0
    %442 = vmatpush.bf16.msra.mxu0 0
    %443 = vmatpush.bf16.msra.mxu0 0
    %444 = vmatpush.bf16.msra.mxu0 0
    %445 = vmatpush.bf16.msra.mxu0 0
    %446 = vmatpush.bf16.msra.mxu0 %v437
    %447 = vmatmul.bf16.gmra.mxu0 %v434
    %v448 = vpop.f32.mrf.mxu0
    %v449 = vadd.f32 0.0, %v448
    %v450 = vpop.f32.mrf.mxu0
    %v451 = vadd.f32 0.0, %v450
    %452 = vdwg.mxu0
    %v454 = vsel %vm248, %v317, 0
    %v457 = vsel %vm252, %v316, 0
    %459 = vmatpush.bf16.msra.mxu0 0
    %460 = vmatpush.bf16.msra.mxu0 0
    %461 = vmatpush.bf16.msra.mxu0 0
    %462 = vmatpush.bf16.msra.mxu0 0
    %463 = vmatpush.bf16.msra.mxu0 0
    %464 = vmatpush.bf16.msra.mxu0 0
    %465 = vmatpush.bf16.msra.mxu0 0
    %466 = vmatpush.bf16.msra.mxu0 %v457
    %467 = vmatmul.bf16.gmra.mxu0 %v454
    %v468 = vpop.f32.mrf.mxu0
    %v469 = vadd.f32 %v449, %v468
    %v470 = vpop.f32.mrf.mxu0
    %v471 = vadd.f32 %v451, %v470
    %472 = vdwg.mxu0
    %473 = vrot.lane.b32.xlu0 %v175, 112
    %v474 = vpop.permute.xlu0 %473
    %475 = vrot.lane.b32.xlu0 %v177, 112
    %v476 = vpop.permute.xlu0 %475
    %479 = vxpose.xlu0.b32.start [1/16] %v474, 128
    %480 = vxpose.xlu0.b32.cont [2/16] %v476, 128
    %481 = vxpose.xlu0.b32.cont [3/16] 0.0, 128
    %482 = vxpose.xlu0.b32.cont [4/16] 0.0, 128
    %483 = vxpose.xlu0.b32.cont [5/16] 0.0, 128
    %484 = vxpose.xlu0.b32.cont [6/16] 0.0, 128
    %485 = vxpose.xlu0.b32.cont [7/16] 0.0, 128
    %486 = vxpose.xlu0.b32.cont [8/16] 0.0, 128
    %487 = vxpose.xlu0.b32.cont [9/16] 0.0, 128
    %488 = vxpose.xlu0.b32.cont [10/16] 0.0, 128
    %489 = vxpose.xlu0.b32.cont [11/16] 0.0, 128
    %490 = vxpose.xlu0.b32.cont [12/16] 0.0, 128
    %491 = vxpose.xlu0.b32.cont [13/16] 0.0, 128
    %492 = vxpose.xlu0.b32.cont [14/16] 0.0, 128
    %493 = vxpose.xlu0.b32.cont [15/16] 0.0, 128
    %494 = vxpose.xlu0.b32.end [16/16] 0.0, 128
    %v495 = vpop.trf.xlu0
    %v496 = vpop.trf.xlu0
    %v497 = vpop.trf.xlu0
    %v498 = vpop.trf.xlu0
    %v499 = vpop.trf.xlu0
    %v500 = vpop.trf.xlu0
    %v501 = vpop.trf.xlu0
    %v502 = vpop.trf.xlu0
    %v503 = vpop.trf.xlu0
    %v504 = vpop.trf.xlu0
    %v505 = vpop.trf.xlu0
    %v506 = vpop.trf.xlu0
    %v507 = vpop.trf.xlu0
    %v508 = vpop.trf.xlu0
    %v509 = vpop.trf.xlu0
    %v510 = vpop.trf.xlu0
    %v511 = vpack.c.bf16 %v495, %v495
    %512 = vrot.lane.b32.xlu0 %v213, 112
    %v513 = vpop.permute.xlu0 %512
    %v515 = vsel %vm248, %v513, 0
    %v518 = vsel %vm252, %v511, 0
    %520 = vmatpush.bf16.msra.mxu0 0
    %521 = vmatpush.bf16.msra.mxu0 0
    %522 = vmatpush.bf16.msra.mxu0 0
    %523 = vmatpush.bf16.msra.mxu0 0
    %524 = vmatpush.bf16.msra.mxu0 0
    %525 = vmatpush.bf16.msra.mxu0 0
    %526 = vmatpush.bf16.msra.mxu0 0
    %527 = vmatpush.bf16.msra.mxu0 %v518
    %528 = vmatmul.bf16.gmra.mxu0 %v515
    %v529 = vpop.f32.mrf.mxu0
    %v530 = vadd.f32 0.0, %v529
    %v531 = vpop.f32.mrf.mxu0
    %v532 = vadd.f32 0.0, %v531
    %533 = vdwg.mxu0
    %v534 = vmul.f32 %v530, 0.35355338
    %v535 = vmul.f32 %v532, 0.35355338
    %v536 = vadd.f32 %v534, %v104
    %v537 = vadd.f32 %v535, %v105
    %v538 = vsel %vm274, %v536, -inf
    %539 = vmax.xlane.f32.xlu0 %v538
    %v540 = vpop.xlane.xlu0 %539
    %v541 = vsel %vm274, %v537, -inf
    %542 = vmax.xlane.f32.xlu0 %v541
    %v543 = vpop.xlane.xlu0 %542
    %v544 = vsub.f32 %v536, %v540
    %v545 = vsub.f32 %v537, %v543
    %v546 = vmul.f32 %v544, 1.442695
    %v547 = vpow.pop %v546
    %v548 = vmul.f32 %v545, 1.442695
    %v549 = vpow.pop %v548
    %v550 = vsel %vm274, %v547, 0.0
    %551 = vadd.xlane.f32.xlu0 %v550
    %v552 = vpop.xlane.xlu0 %551
    %v553 = vsel %vm274, %v549, 0.0
    %554 = vadd.xlane.f32.xlu0 %v553
    %v555 = vpop.xlane.xlu0 %554
    %v556 = vrcp.pop %v552
    %v557 = vrcp.pop %v555
    %v558 = vmul.f32 %v547, %v556
    %v559 = vmul.f32 %v549, %v557
    %v560 = vpack.c.bf16 %v559, %v558
    %561 = vrot.lane.b32.xlu0 %v247, 112
    %v562 = vpop.permute.xlu0 %561
    %v565 = vsel %vm274, %v560, 0
    %567 = vmatpush.bf16.msra.mxu0 0
    %568 = vmatpush.bf16.msra.mxu0 0
    %569 = vmatpush.bf16.msra.mxu0 0
    %570 = vmatpush.bf16.msra.mxu0 0
    %571 = vmatpush.bf16.msra.mxu0 0
    %572 = vmatpush.bf16.msra.mxu0 0
    %573 = vmatpush.bf16.msra.mxu0 0
    %574 = vmatpush.bf16.msra.mxu0 %v562
    %575 = vmatmul.bf16.gmra.mxu0 %v565
    %v576 = vpop.f32.mrf.mxu0
    %v577 = vadd.f32 0.0, %v576
    %v578 = vpop.f32.mrf.mxu0
    %v579 = vadd.f32 0.0, %v578
    %580 = vdwg.mxu0
    %v581 = vld [vmem:[%s8 + $0x10] sm:$0xff]
    %v582 = vpack.c.bf16 %v581, %v581
    %v583 = vpack.c.bf16 %v579, %v577
    %v585 = vsel %vm248, %v583, 0
    %v588 = vsel %vm252, %v582, 0
    %590 = vmatpush.bf16.msra.mxu0 0
    %591 = vmatpush.bf16.msra.mxu0 0
    %592 = vmatpush.bf16.msra.mxu0 0
    %593 = vmatpush.bf16.msra.mxu0 0
    %594 = vmatpush.bf16.msra.mxu0 0
    %595 = vmatpush.bf16.msra.mxu0 0
    %596 = vmatpush.bf16.msra.mxu0 0
    %597 = vmatpush.bf16.msra.mxu0 %v588
    %598 = vmatmul.bf16.gmra.mxu0 %v585
    %v599 = vpop.f32.mrf.mxu0
    %v600 = vadd.f32 0.0, %v599
    %v601 = vpop.f32.mrf.mxu0
    %v602 = vadd.f32 0.0, %v601
    %603 = vdwg.mxu0
    %v604 = vadd.f32 %v469, %v600
    %v605 = vadd.f32 %v471, %v602
    %606 = vrot.lane.b32.xlu0 %v175, 104
    %v607 = vpop.permute.xlu0 %606
    %608 = vrot.lane.b32.xlu0 %v177, 104
    %v609 = vpop.permute.xlu0 %608
    %612 = vxpose.xlu0.b32.start [1/16] %v607, 128
    %613 = vxpose.xlu0.b32.cont [2/16] %v609, 128
    %614 = vxpose.xlu0.b32.cont [3/16] 0.0, 128
    %615 = vxpose.xlu0.b32.cont [4/16] 0.0, 128
    %616 = vxpose.xlu0.b32.cont [5/16] 0.0, 128
    %617 = vxpose.xlu0.b32.cont [6/16] 0.0, 128
    %618 = vxpose.xlu0.b32.cont [7/16] 0.0, 128
    %619 = vxpose.xlu0.b32.cont [8/16] 0.0, 128
    %620 = vxpose.xlu0.b32.cont [9/16] 0.0, 128
    %621 = vxpose.xlu0.b32.cont [10/16] 0.0, 128
    %622 = vxpose.xlu0.b32.cont [11/16] 0.0, 128
    %623 = vxpose.xlu0.b32.cont [12/16] 0.0, 128
    %624 = vxpose.xlu0.b32.cont [13/16] 0.0, 128
    %625 = vxpose.xlu0.b32.cont [14/16] 0.0, 128
    %626 = vxpose.xlu0.b32.cont [15/16] 0.0, 128
    %627 = vxpose.xlu0.b32.end [16/16] 0.0, 128
    %v628 = vpop.trf.xlu0
    %v629 = vpop.trf.xlu0
    %v630 = vpop.trf.xlu0
    %v631 = vpop.trf.xlu0
    %v632 = vpop.trf.xlu0
    %v633 = vpop.trf.xlu0
    %v634 = vpop.trf.xlu0
    %v635 = vpop.trf.xlu0
    %v636 = vpop.trf.xlu0
    %v637 = vpop.trf.xlu0
    %v638 = vpop.trf.xlu0
    %v639 = vpop.trf.xlu0
    %v640 = vpop.trf.xlu0
    %v641 = vpop.trf.xlu0
    %v642 = vpop.trf.xlu0
    %v643 = vpop.trf.xlu0
    %v644 = vpack.c.bf16 %v628, %v628
    %645 = vrot.lane.b32.xlu0 %v213, 104
    %v646 = vpop.permute.xlu0 %645
    %v648 = vsel %vm248, %v646, 0
    %v651 = vsel %vm252, %v644, 0
    %653 = vmatpush.bf16.msra.mxu0 0
    %654 = vmatpush.bf16.msra.mxu0 0
    %655 = vmatpush.bf16.msra.mxu0 0
    %656 = vmatpush.bf16.msra.mxu0 0
    %657 = vmatpush.bf16.msra.mxu0 0
    %658 = vmatpush.bf16.msra.mxu0 0
    %659 = vmatpush.bf16.msra.mxu0 0
    %660 = vmatpush.bf16.msra.mxu0 %v651
    %661 = vmatmul.bf16.gmra.mxu0 %v648
    %v662 = vpop.f32.mrf.mxu0
    %v663 = vadd.f32 0.0, %v662
    %v664 = vpop.f32.mrf.mxu0
    %v665 = vadd.f32 0.0, %v664
    %666 = vdwg.mxu0
    %v667 = vmul.f32 %v663, 0.35355338
    %v668 = vmul.f32 %v665, 0.35355338
    %v669 = vadd.f32 %v667, %v104
    %v670 = vadd.f32 %v668, %v105
    %v671 = vsel %vm274, %v669, -inf
    %672 = vmax.xlane.f32.xlu0 %v671
    %v673 = vpop.xlane.xlu0 %672
    %v674 = vsel %vm274, %v670, -inf
    %675 = vmax.xlane.f32.xlu0 %v674
    %v676 = vpop.xlane.xlu0 %675
    %v677 = vsub.f32 %v669, %v673
    %v678 = vsub.f32 %v670, %v676
    %v679 = vmul.f32 %v677, 1.442695
    %v680 = vpow.pop %v679
    %v681 = vmul.f32 %v678, 1.442695
    %v682 = vpow.pop %v681
    %v683 = vsel %vm274, %v680, 0.0
    %684 = vadd.xlane.f32.xlu0 %v683
    %v685 = vpop.xlane.xlu0 %684
    %v686 = vsel %vm274, %v682, 0.0
    %687 = vadd.xlane.f32.xlu0 %v686
    %v688 = vpop.xlane.xlu0 %687
    %v689 = vrcp.pop %v685
    %v690 = vrcp.pop %v688
    %v691 = vmul.f32 %v680, %v689
    %v692 = vmul.f32 %v682, %v690
    %v693 = vpack.c.bf16 %v692, %v691
    %694 = vrot.lane.b32.xlu0 %v247, 104
    %v695 = vpop.permute.xlu0 %694
    %v698 = vsel %vm274, %v693, 0
    %700 = vmatpush.bf16.msra.mxu0 0
    %701 = vmatpush.bf16.msra.mxu0 0
    %702 = vmatpush.bf16.msra.mxu0 0
    %703 = vmatpush.bf16.msra.mxu0 0
    %704 = vmatpush.bf16.msra.mxu0 0
    %705 = vmatpush.bf16.msra.mxu0 0
    %706 = vmatpush.bf16.msra.mxu0 0
    %707 = vmatpush.bf16.msra.mxu0 %v695
    %708 = vmatmul.bf16.gmra.mxu0 %v698
    %v709 = vpop.f32.mrf.mxu0
    %v710 = vadd.f32 0.0, %v709
    %v711 = vpop.f32.mrf.mxu0
    %v712 = vadd.f32 0.0, %v711
    %713 = vdwg.mxu0
    %v714 = vld [vmem:[%s8 + $0x18] sm:$0xff]
    %v715 = vpack.c.bf16 %v714, %v714
    %v716 = vpack.c.bf16 %v712, %v710
    %v718 = vsel %vm248, %v716, 0
    %v721 = vsel %vm252, %v715, 0
    %723 = vmatpush.bf16.msra.mxu0 0
    %724 = vmatpush.bf16.msra.mxu0 0
    %725 = vmatpush.bf16.msra.mxu0 0
    %726 = vmatpush.bf16.msra.mxu0 0
    %727 = vmatpush.bf16.msra.mxu0 0
    %728 = vmatpush.bf16.msra.mxu0 0
    %729 = vmatpush.bf16.msra.mxu0 0
    %730 = vmatpush.bf16.msra.mxu0 %v721
    %731 = vmatmul.bf16.gmra.mxu0 %v718
    %v732 = vpop.f32.mrf.mxu0
    %v733 = vadd.f32 0.0, %v732
    %v734 = vpop.f32.mrf.mxu0
    %v735 = vadd.f32 0.0, %v734
    %736 = vdwg.mxu0
    %v737 = vadd.f32 %v604, %v733
    %v738 = vadd.f32 %v605, %v735
    %v739 = vld [vmem:[%s9] sm:$0x1]
    %v741 = vperm.slane %v739, 0
    %v743 = vadd.f32 %v737, %v741
    %v744 = vadd.f32 %v738, %v741
    %v745 = vld [vmem:[%s14] sm:$0x1]
    %v746 = vld [vmem:[%s15] sm:$0x1]
    %v747 = vadd.f32 %v102, %v743
    %v748 = vadd.f32 %v103, %v744
    %v749 = vsel %vm127, %v747, 0.0
    %750 = vadd.xlane.f32.xlu0 %v749
    %v751 = vpop.xlane.xlu0 %750
    %v752 = vsel %vm127, %v748, 0.0
    %753 = vadd.xlane.f32.xlu0 %v752
    %v754 = vpop.xlane.xlu0 %753
    %v755 = vrcp.pop 32.0
    %v756 = vmul.f32 32.0, %v755
    %v757 = vsub.f32 1.0, %v756
    %v758 = vmul.f32 %v755, %v757
    %v759 = vadd.f32 %v755, %v758
    %vm760 = vweird.f32 %v755
    %v761 = vsel %vm760, %v755, %v759
    %v762 = vmul.f32 %v751, %v761
    %v763 = vmul.f32 %v754, %v761
    %v764 = vsub.f32 %v747, %v762
    %v765 = vsub.f32 %v748, %v763
    %v766 = vmul.f32 %v764, %v764
    %v767 = vmul.f32 %v765, %v765
    %v768 = vsel %vm127, %v766, 0.0
    %769 = vadd.xlane.f32.xlu0 %v768
    %v770 = vpop.xlane.xlu0 %769
    %v771 = vsel %vm127, %v767, 0.0
    %772 = vadd.xlane.f32.xlu0 %v771
    %v773 = vpop.xlane.xlu0 %772
    %v774 = vmul.f32 %v770, %v761
    %v775 = vmul.f32 %v773, %v761
    %v776 = vadd.f32 %v774, 1e-05
    %v777 = vadd.f32 %v775, 1e-05
    %v778 = vrsqrt.pop %v776
    %v779 = vmul.f32 %v778, %v776
    %v780 = vmul.f32 %v779, %v778
    %v781 = vmul.f32 0.5, %v780
    %v782 = vsub.f32 1.5, %v781
    %v783 = vmul.f32 %v778, %v782
    %vm784 = vweird.f32 %v776
    %vm785 = vweird.f32 %v778
    %vm786 = vmor %vm784, %vm785
    %v787 = vsel %vm786, %v778, %v783
    %v788 = vrsqrt.pop %v777
    %v789 = vmul.f32 %v788, %v777
    %v790 = vmul.f32 %v789, %v788
    %v791 = vmul.f32 0.5, %v790
    %v792 = vsub.f32 1.5, %v791
    %v793 = vmul.f32 %v788, %v792
    %vm794 = vweird.f32 %v777
    %vm795 = vweird.f32 %v788
    %vm796 = vmor %vm794, %vm795
    %v797 = vsel %vm796, %v788, %v793
    %v798 = vmul.f32 %v764, %v787
    %v799 = vmul.f32 %v765, %v797
    %v801 = vperm.slane %v745, 0
    %v803 = vmul.f32 %v798, %v801
    %v804 = vmul.f32 %v799, %v801
    %v806 = vperm.slane %v746, 0
    %v808 = vadd.f32 %v803, %v806
    %v809 = vadd.f32 %v804, %v806
    %v810 = vpack.c.bf16 %v809, %v808
    %v811 = vld [vmem:[#allocation7] sm:$0xf]
    %v812 = vld [vmem:[#allocation7 + $0x4] sm:$0xf]
    %v813 = vld [vmem:[#allocation7 + $0x8] sm:$0xf]
    %v814 = vld [vmem:[#allocation7 + $0xc] sm:$0xf]
    %v815 = vld [vmem:[%s11] sm:$0x1]
    %v817 = vperm.slane %v815, 0
    %v823 = vunpack.c.l.b16 %v811
    %v824 = vunpack.c.l.b16 %v812
    %v825 = vunpack.c.l.b16 %v813
    %v826 = vunpack.c.l.b16 %v814
    %v827 = vpack.c.b16 %v824, %v823
    %v828 = vpack.c.b16 %v826, %v825
    %v832 = vsel %vm127, %v810, 0
    %834 = vmatpush.bf16.msra.mxu0 0
    %835 = vmatpush.bf16.msra.mxu0 0
    %836 = vmatpush.bf16.msra.mxu0 0
    %837 = vmatpush.bf16.msra.mxu0 0
    %838 = vmatpush.bf16.msra.mxu0 0
    %839 = vmatpush.bf16.msra.mxu0 0
    %840 = vmatpush.bf16.msra.mxu0 %v828
    %841 = vmatpush.bf16.msra.mxu0 %v827
    %842 = vmatmul.bf16.gmra.mxu0 %v832
    %v843 = vpop.f32.mrf.mxu0
    %v844 = vadd.f32 %v817, %v843
    %v845 = vpop.f32.mrf.mxu0
    %v846 = vadd.f32 %v817, %v845
    %847 = vdwg.mxu0
    %v848 = vmax.f32 %v844, 0.0
    %v849 = vmax.f32 %v846, 0.0
    %v850 = vpack.c.bf16 %v849, %v848
    %v851 = vld [vmem:[%s12] sm:$0xf]
    %v852 = vld [vmem:[%s12 + $0x4] sm:$0xf]
    %v853 = vld [vmem:[%s12 + $0x8] sm:$0xf]
    %v854 = vld [vmem:[%s12 + $0xc] sm:$0xf]
    %v855 = vld [vmem:[%s12 + $0x10] sm:$0xf]
    %v856 = vld [vmem:[%s12 + $0x14] sm:$0xf]
    %v857 = vld [vmem:[%s12 + $0x18] sm:$0xf]
    %v858 = vld [vmem:[%s12 + $0x1c] sm:$0xf]
    %v859 = vld [vmem:[%s12 + $0x20] sm:$0xf]
    %v860 = vld [vmem:[%s12 + $0x24] sm:$0xf]
    %v861 = vld [vmem:[%s12 + $0x28] sm:$0xf]
    %v862 = vld [vmem:[%s12 + $0x2c] sm:$0xf]
    %v863 = vld [vmem:[%s12 + $0x30] sm:$0xf]
    %v864 = vld [vmem:[%s12 + $0x34] sm:$0xf]
    %v865 = vld [vmem:[%s12 + $0x38] sm:$0xf]
    %v866 = vld [vmem:[%s12 + $0x3c] sm:$0xf]
    %v867 = vld [vmem:[%s13] sm:$0x1]
    %v869 = vperm.slane %v867, 0
    %v887 = vunpack.c.l.b16 %v851
    %v888 = vunpack.c.l.b16 %v852
    %v889 = vunpack.c.l.b16 %v853
    %v890 = vunpack.c.l.b16 %v854
    %v891 = vunpack.c.l.b16 %v855
    %v892 = vunpack.c.l.b16 %v856
    %v893 = vunpack.c.l.b16 %v857
    %v894 = vunpack.c.l.b16 %v858
    %v895 = vunpack.c.l.b16 %v859
    %v896 = vunpack.c.l.b16 %v860
    %v897 = vunpack.c.l.b16 %v861
    %v898 = vunpack.c.l.b16 %v862
    %v899 = vunpack.c.l.b16 %v863
    %v900 = vunpack.c.l.b16 %v864
    %v901 = vunpack.c.l.b16 %v865
    %v902 = vunpack.c.l.b16 %v866
    %v903 = vpack.c.b16 %v888, %v887
    %v904 = vpack.c.b16 %v890, %v889
    %v905 = vpack.c.b16 %v892, %v891
    %v906 = vpack.c.b16 %v894, %v893
    %v907 = vpack.c.b16 %v896, %v895
    %v908 = vpack.c.b16 %v898, %v897
    %v909 = vpack.c.b16 %v900, %v899
    %v910 = vpack.c.b16 %v902, %v901
    %919 = vmatpush.bf16.msra.mxu0 %v910
    %920 = vmatpush.bf16.msra.mxu0 %v909
    %921 = vmatpush.bf16.msra.mxu0 %v908
    %922 = vmatpush.bf16.msra.mxu0 %v907
    %923 = vmatpush.bf16.msra.mxu0 %v906
    %924 = vmatpush.bf16.msra.mxu0 %v905
    %925 = vmatpush.bf16.msra.mxu0 %v904
    %926 = vmatpush.bf16.msra.mxu0 %v903
    %927 = vmatmul.bf16.gmra.mxu0 %v850
    %v928 = vpop.f32.mrf.mxu0
    %v929 = vadd.f32 %v869, %v928
    %v930 = vpop.f32.mrf.mxu0
    %v931 = vadd.f32 %v869, %v930
    %932 = vdwg.mxu0
    %v933 = vadd.f32 %v808, %v929
    %v934 = vadd.f32 %v809, %v931
    %v935 = vsel %vm127, %v933, 0.0
    %936 = vadd.xlane.f32.xlu0 %v935
    %v937 = vpop.xlane.xlu0 %936
    %v938 = vsel %vm127, %v934, 0.0
    %939 = vadd.xlane.f32.xlu0 %v938
    %v940 = vpop.xlane.xlu0 %939
    %v941 = vmul.f32 %v937, %v761
    %v942 = vmul.f32 %v940, %v761
    %v943 = vsub.f32 %v933, %v941
    %v944 = vsub.f32 %v934, %v942
    %v945 = vmul.f32 %v943, %v943
    %v946 = vmul.f32 %v944, %v944
    %v947 = vsel %vm127, %v945, 0.0
    %948 = vadd.xlane.f32.xlu0 %v947
    %v949 = vpop.xlane.xlu0 %948
    %v950 = vsel %vm127, %v946, 0.0
    %951 = vadd.xlane.f32.xlu0 %v950
    %v952 = vpop.xlane.xlu0 %951
    %v953 = vmul.f32 %v949, %v761
    %v954 = vmul.f32 %v952, %v761
    %v955 = vadd.f32 %v953, 1e-05
    %v956 = vadd.f32 %v954, 1e-05
    %v957 = vrsqrt.pop %v955
    %v958 = vmul.f32 %v957, %v955
    %v959 = vmul.f32 %v958, %v957
    %v960 = vmul.f32 0.5, %v959
    %v961 = vsub.f32 1.5, %v960
    %v962 = vmul.f32 %v957, %v961
    %vm963 = vweird.f32 %v955
    %vm964 = vweird.f32 %v957
    %vm965 = vmor %vm963, %vm964
    %v966 = vsel %vm965, %v957, %v962
    %v967 = vrsqrt.pop %v956
    %v968 = vmul.f32 %v967, %v956
    %v969 = vmul.f32 %v968, %v967
    %v970 = vmul.f32 0.5, %v969
    %v971 = vsub.f32 1.5, %v970
    %v972 = vmul.f32 %v967, %v971
    %vm973 = vweird.f32 %v956
    %vm974 = vweird.f32 %v967
    %vm975 = vmor %vm973, %vm974
    %v976 = vsel %vm975, %v967, %v972
    %v977 = vmul.f32 %v943, %v966
    %v978 = vmul.f32 %v944, %v976
    %v979 = vmul.f32 %v977, %v801
    %v980 = vmul.f32 %v978, %v801
    %v981 = vadd.f32 %v979, %v806
    %v982 = vadd.f32 %v980, %v806
    %983 = vst.msk [vmem:[#allocation8] sm:$0xff] %vm127, %v981
    %984 = vst.msk [vmem:[#allocation8 + $0x8] sm:$0xff] %vm127, %v982
    // Predicated region
    $region78: #{tpu_custom_call.1} parent=1 // pred_check
      _
    $region79: #{tpu_custom_call.1} parent=1 // pred_check_branch
      %986 = sbr.rel (0) target = $region81
    $region80: #{tpu_custom_call.1} parent=1 // pred_region
      %988 = vsyncadd [#allocation4], 0
      %s989 = sshll.u32 [#allocation8], 4
      %s990 = int_to_ptr.vmem [resolvable:$true] %s989
      %s991 = sshll.u32 %s16, 4
      %s992 = int_to_ptr.hbm [resolvable:$true] %s991
      %997 = dma.vmem_to_hbm [thread:$0]  %s990, 256, %s992, [#allocation4], 128, 128, 8
    $region81: #{tpu_custom_call.1} parent=1 // pred_fallthru
      _
    // Predicated region
    $region82: #{tpu_custom_call.1} parent=1 // pred_check
      _
    $region83: #{tpu_custom_call.1} parent=1 // pred_check_branch
      %999 = sbr.rel (0) target = $region85
    $region84: #{tpu_custom_call.1} parent=1 // pred_region
      %1001 = dma.done [#allocation4], 256
    $region85: #{tpu_custom_call.1} parent=1 // pred_fallthru
      _
    %1002 = vsyncpa [#allocation3], 1
    %1003 = vsyncpa [#allocation6], 1
    %1004 = vsyncpa [#allocation4], 1

</llo_original>
